<compile_context>
chip_gen: v7x
topology: tpu7x:2x2x1
jax: 0.10.0
libtpu: 0.0.40
codegen_flags: <defaults>
</compile_context>

<pallas_src>
from functools import partial

import jax
import jax.numpy as jnp
from jax import lax
from jax.experimental import pallas as pl
from jax.experimental.pallas import tpu as pltpu

EXPANSION = 4


# ----------------------------------------------------------------------------
# Pallas kernels
# ----------------------------------------------------------------------------
def _mm_shift_kernel(x_ref, w_ref, b_ref, o_ref, *, relu):
    """out = relu?( x @ w_folded + shift )  -- BN scale pre-folded into w."""
    y = jnp.dot(x_ref[...], w_ref[...], preferred_element_type=jnp.float32)
    y = y + b_ref[...]
    if relu:
        y = jnp.maximum(y, 0.0)
    o_ref[...] = y.astype(o_ref.dtype)


def _fused_tail_kernel(*refs, taps, Ho, Wo, project):
    """Fused: 3x3 conv (tap accumulation) + bn2 + relu + 1x1 conv3 + bn3
    + shortcut (+ optional 1x1 projection + bn) + residual add + relu.

    Grid is over the batch dimension; everything stays in VMEM."""
    if project:
        z_ref, wz_ref, b2_ref, w3_ref, b3_ref, sc_ref, ws_ref, bs_ref, o_ref = refs
    else:
        z_ref, wz_ref, b2_ref, w3_ref, b3_ref, sc_ref, o_ref = refs

    D = z_ref.shape[-1]           # s*s*planes channels of the space-to-depth input
    P = wz_ref.shape[-1]          # planes
    M2 = Ho * Wo

    # 3x3 conv as a sum over contiguous shifted tap windows of the
    # space-to-depth input (no materialized im2col), f32 MXU accumulation.
    acc = jnp.zeros((M2, P), jnp.float32)
    for t, (oh, ow) in enumerate(taps):
        slab = z_ref[0, oh:oh + Ho, ow:ow + Wo, :]            # (Ho, Wo, D), contiguous
        acc = acc + jnp.dot(slab.reshape(M2, D), wz_ref[t],
                            preferred_element_type=jnp.float32)
    y2 = jnp.maximum(acc + b2_ref[...], 0.0)                  # bn2 shift + relu (f32)

    # conv3 (1x1) + bn3 shift (scale folded into w3).
    y3 = jnp.dot(y2.astype(w3_ref.dtype), w3_ref[...],
                 preferred_element_type=jnp.float32) + b3_ref[...]

    # shortcut: identity, or fused 1x1 strided projection + bn shift.
    if project:
        sc = jnp.dot(sc_ref[0], ws_ref[...],
                     preferred_element_type=jnp.float32) + bs_ref[...]
    else:
        sc = sc_ref[0].astype(jnp.float32)

    o_ref[0] = jnp.maximum(y3 + sc, 0.0).astype(o_ref.dtype)


# ----------------------------------------------------------------------------
# Pallas wrappers
# ----------------------------------------------------------------------------
def _align_up(x, m):
    return ((x + m - 1) // m) * m


def matmul_shift(x2d, w, shift, *, relu, out_dtype=None, tm=None):
    """Fused (matmul + BN-shift + optional ReLU), tiled over rows."""
    M, K = x2d.shape
    Kw, Cout = w.shape
    assert K == Kw
    out_dtype = out_dtype or x2d.dtype

    if tm is None:
        # Large, memory-bound-friendly tiles; keep >=2 grid steps (v7x has 2 TCs).
        tm = min(512, _align_up(pl.cdiv(M, 2), 8))
    tm = min(tm, _align_up(M, 8))
    grid_m = pl.cdiv(M, tm)
    Mp = grid_m * tm
    xp = x2d if Mp == M else jnp.pad(x2d, ((0, Mp - M), (0, 0)))  # skip pad if aligned
    b = shift.reshape(1, -1).astype(jnp.float32)

    out = pl.pallas_call(
        partial(_mm_shift_kernel, relu=relu),
        out_shape=jax.ShapeDtypeStruct((Mp, Cout), out_dtype),
        grid=(grid_m,),
        in_specs=[
            pl.BlockSpec((tm, K), lambda i: (i, 0)),
            pl.BlockSpec((K, Cout), lambda i: (0, 0)),
            pl.BlockSpec((1, Cout), lambda i: (0, 0)),
        ],
        out_specs=pl.BlockSpec((tm, Cout), lambda i: (i, 0)),
        compiler_params=pltpu.CompilerParams(dimension_semantics=("parallel",)),
    )(xp, w, b)
    return out if Mp == M else out[:M]


def fused_tail(z, wz, b2, w3, b3, shortcut_args, *, taps, Ho, Wo, out_c,
               project, out_dtype):
    """conv2 + bn2 + relu + conv3 + bn3 + shortcut + add + relu, grid over batch."""
    N, Hq, Wq, D = z.shape
    T, _, planes = wz.shape
    M2 = Ho * Wo
    b2r = b2.reshape(1, -1).astype(jnp.float32)
    b3r = b3.reshape(1, -1).astype(jnp.float32)

    in_specs = [
        pl.BlockSpec((1, Hq, Wq, D), lambda n: (n, 0, 0, 0)),
        pl.BlockSpec((T, D, planes), lambda n: (0, 0, 0)),
        pl.BlockSpec((1, planes), lambda n: (0, 0)),
        pl.BlockSpec((planes, out_c), lambda n: (0, 0)),
        pl.BlockSpec((1, out_c), lambda n: (0, 0)),
    ]
    if project:
        sc_in, ws, bs = shortcut_args
        Cin = sc_in.shape[-1]
        bsr = bs.reshape(1, -1).astype(jnp.float32)
        in_specs += [
            pl.BlockSpec((1, M2, Cin), lambda n: (n, 0, 0)),
            pl.BlockSpec((Cin, out_c), lambda n: (0, 0)),
            pl.BlockSpec((1, out_c), lambda n: (0, 0)),
        ]
        args = (z, wz, b2r, w3, b3r, sc_in, ws, bsr)
    else:
        (sc_in,) = shortcut_args
        in_specs += [pl.BlockSpec((1, M2, out_c), lambda n: (n, 0, 0))]
        args = (z, wz, b2r, w3, b3r, sc_in)

    return pl.pallas_call(
        partial(_fused_tail_kernel, taps=taps, Ho=Ho, Wo=Wo, project=project),
        out_shape=jax.ShapeDtypeStruct((N, M2, out_c), out_dtype),
        grid=(N,),
        in_specs=in_specs,
        out_specs=pl.BlockSpec((1, M2, out_c), lambda n: (n, 0, 0)),
        compiler_params=pltpu.CompilerParams(dimension_semantics=("parallel",)),
    )(*args)


# ----------------------------------------------------------------------------
# Plain-JAX glue (layout plumbing only, ~1x activation volume)
# ----------------------------------------------------------------------------
def fold_bn(w, gamma, beta, mean, var, eps=1e-5):
    """Fold BN scale into the conv weight's output-channel columns."""
    scale = gamma / jnp.sqrt(var + eps)
    return w * scale, beta - mean * scale


def space_to_depth_pad(y, s):
    """Pad spatially by 1 and space-to-depth by stride s: the strided 3x3 conv
    becomes a stride-1 tap sum over contiguous windows of the result."""
    N, H, W, C = y.shape
    Hp, Wp = H + 2, W + 2
    Hq, Wq = -(-Hp // s), -(-Wp // s)
    yp = jnp.pad(y, ((0, 0), (1, Hq * s - Hp + 1), (1, Wq * s - Wp + 1), (0, 0)))
    z = yp.reshape(N, Hq, s, Wq, s, C)
    z = z.transpose(0, 1, 3, 2, 4, 5).reshape(N, Hq, Wq, s * s * C)
    return z, Hq, Wq


def build_tap_weights(w2, s):
    """Regroup the (3,3,C,P) weight into per-tap (s*s*C, P) slabs matching the
    space-to-depth channel layout (ph, pw, c)."""
    KH, KW, C, P = w2.shape
    td = (KH - 1) // s + 1
    taps = [(oh, ow) for oh in range(td) for ow in range(td)]
    wz = jnp.zeros((len(taps), s * s * C, P), w2.dtype)
    for t, (oh, ow) in enumerate(taps):
        for ph in range(s):
            for pw in range(s):
                kh, kw = s * oh + ph, s * ow + pw
                if kh < KH and kw < KW:
                    row0 = (ph * s + pw) * C
                    wz = wz.at[t, row0:row0 + C, :].set(w2[kh, kw])
    return wz, taps


# ----------------------------------------------------------------------------
# Bottleneck forward
# ----------------------------------------------------------------------------
@partial(jax.jit, static_argnames=("stride", "compute_dtype"))
def bottleneck_forward(x, params, *, stride, compute_dtype=jnp.float32):
    """x: (N, H, W, Cin).  Returns (N, Ho, Wo, planes*4).
    compute_dtype=jnp.bfloat16 halves HBM traffic / doubles MXU rate;
    BN shifts + accumulation stay f32 either way."""
    N, H, W, Cin = x.shape
    planes = params["w1"].shape[1]
    out_c = planes * EXPANSION
    cd = compute_dtype
    Ho = (H - 1) // stride + 1
    Wo = (W - 1) // stride + 1

    w1f, b1 = fold_bn(params["w1"], *params["bn1"])
    w2f, b2 = fold_bn(params["w2"], *params["bn2"])
    w3f, b3 = fold_bn(params["w3"], *params["bn3"])

    # conv1 (1x1) + bn1 + relu   (1x1 conv == channel matmul)
    y1 = matmul_shift(x.reshape(N * H * W, Cin).astype(cd), w1f.astype(cd),
                      b1, relu=True, out_dtype=cd)
    y1 = y1.reshape(N, H, W, planes)

    # layout glue for the 3x3: pad + space-to-depth (1x volume, no 9x im2col)
    z, Hq, Wq = space_to_depth_pad(y1, stride)
    wz, taps = build_tap_weights(w2f, stride)

    project = (stride != 1) or (Cin != out_c)
    if project:
        wsf, bs = fold_bn(params["ws"], *params["bns"])
        sc_in = x[:, ::stride, ::stride, :].reshape(N, Ho * Wo, Cin).astype(cd)
        shortcut_args = (sc_in, wsf.astype(cd), bs)
    else:
        shortcut_args = (x.reshape(N, H * W, out_c),)

    out = fused_tail(z.astype(cd), wz.astype(cd), b2, w3f.astype(cd), b3,
                     shortcut_args, taps=taps, Ho=Ho, Wo=Wo, out_c=out_c,
                     project=project, out_dtype=x.dtype)
    return out.reshape(N, Ho, Wo, out_c)


# ----------------------------------------------------------------------------
# Pure-JAX reference (PyTorch-equivalent padding: explicit pad=1 on the 3x3)
# ----------------------------------------------------------------------------
def bottleneck_reference(x, params, *, stride):
    def conv(v, w, strides, padding):
        dn = lax.conv_dimension_numbers(v.shape, w.shape, ("NHWC", "HWIO", "NHWC"))
        return lax.conv_general_dilated(v, w, strides, padding, dimension_numbers=dn)

    def bn(v, p):
        gamma, beta, mean, var = p
        scale = gamma / jnp.sqrt(var + 1e-5)
        return v * scale + (beta - mean * scale)

    Cin = x.shape[-1]
    planes = params["w1"].shape[1]
    out_c = planes * EXPANSION

    y = jax.nn.relu(bn(conv(x, params["w1"].reshape(1, 1, Cin, planes),
                            (1, 1), "VALID"), params["bn1"]))
    y = jax.nn.relu(bn(conv(y, params["w2"], (stride, stride),
                            ((1, 1), (1, 1))), params["bn2"]))
    y = bn(conv(y, params["w3"].reshape(1, 1, planes, out_c), (1, 1), "VALID"),
           params["bn3"])
    if stride != 1 or Cin != out_c:
        sc = bn(conv(x, params["ws"].reshape(1, 1, Cin, out_c),
                     (stride, stride), "VALID"), params["bns"])
    else:
        sc = x
    return jax.nn.relu(y + sc)


# ----------------------------------------------------------------------------
# Deterministic parameter init
# ----------------------------------------------------------------------------
def init_params(key, in_planes, planes):
    out_c = planes * EXPANSION
    ks = jax.random.split(key, 20)

    def bn_params(k, c):
        k1, k2, k3, k4 = jax.random.split(k, 4)
        gamma = 1.0 + 0.1 * jax.random.normal(k1, (c,), jnp.float32)
        beta = 0.1 * jax.random.normal(k2, (c,), jnp.float32)
        mean = 0.1 * jax.random.normal(k3, (c,), jnp.float32)
        var = jnp.abs(1.0 + 0.1 * jax.random.normal(k4, (c,), jnp.float32))
        return (gamma, beta, mean, var)

    return {
        "w1": 0.1 * jax.random.normal(ks[0], (in_planes, planes), jnp.float32),
        "bn1": bn_params(ks[1], planes),
        "w2": 0.1 * jax.random.normal(ks[2], (3, 3, planes, planes), jnp.float32),
        "bn2": bn_params(ks[3], planes),
        "w3": 0.1 * jax.random.normal(ks[4], (planes, out_c), jnp.float32),
        "bn3": bn_params(ks[5], out_c),
        "ws": 0.1 * jax.random.normal(ks[6], (in_planes, out_c), jnp.float32),
        "bns": bn_params(ks[7], out_c),
    }


# ----------------------------------------------------------------------------
if __name__ == "__main__":
    key = jax.random.PRNGKey(0)
    kx1, kp1, kx2, kp2 = jax.random.split(key, 4)

    # 1) Projection-shortcut path (stride=2, in_planes != planes*4).
    N, H, W = 2, 16, 16
    in_planes, planes, stride = 16, 8, 2
    x = jax.random.normal(kx1, (N, H, W, in_planes), jnp.float32)
    params = init_params(kp1, in_planes, planes)

    out = jax.block_until_ready(bottleneck_forward(x, params, stride=stride))
    ref = jax.block_until_ready(bottleneck_reference(x, params, stride=stride))
    assert out.shape == ref.shape == (N, H // stride, W // stride, planes * EXPANSION)
    assert jnp.allclose(out, ref, rtol=1e-4, atol=1e-4), "mismatch (projection path)"

    # 2) Identity-shortcut path (stride=1, in_planes == planes*4).
    x2 = jax.random.normal(kx2, (N, H, W, planes * EXPANSION), jnp.float32)
    params2 = init_params(kp2, planes * EXPANSION, planes)
    out2 = jax.block_until_ready(bottleneck_forward(x2, params2, stride=1))
    ref2 = jax.block_until_ready(bottleneck_reference(x2, params2, stride=1))
    assert out2.shape == ref2.shape == (N, H, W, planes * EXPANSION)
    assert jnp.allclose(out2, ref2, rtol=1e-4, atol=1e-4), "mismatch (identity path)"

    # TODO(synk): BatchNorm is eval-mode (running stats); training-mode batch
    # statistics are not implemented in-kernel.
    print("KERNEL_OK")
</pallas_src>

<mosaic_0001>
module attributes {stable_mosaic.version = 11 : i64} {
  func.func @_mm_shift_kernel(%arg0: i32, %arg1: memref<256x16xf32, #tpu.memory_space<vmem>>, %arg2: memref<16x8xf32, #tpu.memory_space<vmem>>, %arg3: memref<1x8xf32, #tpu.memory_space<vmem>>, %arg4: memref<256x8xf32, #tpu.memory_space<vmem>>) attributes {dimension_semantics = [#tpu.dimension_semantics<parallel>], iteration_bounds = array<i64: 2>, scalar_prefetch = 0 : i64, scratch_operands = 0 : i64, tpu.core_type = #tpu.core_type<tc>, window_params = [{transform_indices = @transform_0, window_bounds = array<i64: 256, 16>}, {pipeline_mode = #tpu.pipeline_mode<synchronous>, transform_indices = @transform_1, window_bounds = array<i64: 16, 8>}, {pipeline_mode = #tpu.pipeline_mode<synchronous>, transform_indices = @transform_2, window_bounds = array<i64: 1, 8>}, {transform_indices = @transform_3, window_bounds = array<i64: 256, 8>}]} {
    %c0 = arith.constant 0 : index
    %c0_0 = arith.constant 0 : index
    %0 = vector.load %arg1[%c0, %c0_0] : memref<256x16xf32, #tpu.memory_space<vmem>>, vector<256x16xf32>
    %c0_1 = arith.constant 0 : index
    %c0_2 = arith.constant 0 : index
    %1 = vector.load %arg2[%c0_1, %c0_2] : memref<16x8xf32, #tpu.memory_space<vmem>>, vector<16x8xf32>
    %cst = arith.constant dense<0.000000e+00> : vector<256x8xf32>
    %2 = tpu.matmul %0, %1, %cst {dimension_numbers = #tpu.dot_dimension_numbers<[1], [0], [0], [1], [0, 0, 1, 1], [], []>} : vector<256x16xf32>, vector<16x8xf32>, vector<256x8xf32> -> vector<256x8xf32>
    %c0_3 = arith.constant 0 : index
    %c0_4 = arith.constant 0 : index
    %3 = vector.load %arg3[%c0_3, %c0_4] : memref<1x8xf32, #tpu.memory_space<vmem>>, vector<1x8xf32>
    %4 = vector.broadcast %3 : vector<1x8xf32> to vector<256x8xf32>
    %5 = arith.addf %2, %4 : vector<256x8xf32>
    %cst_5 = arith.constant 0.000000e+00 : f32
    %6 = vector.broadcast %cst_5 : f32 to vector<256x8xf32>
    %7 = arith.maximumf %5, %6 : vector<256x8xf32>
    %c0_6 = arith.constant 0 : index
    %c0_7 = arith.constant 0 : index
    %8 = vector.load %arg4[%c0_6, %c0_7] : memref<256x8xf32, #tpu.memory_space<vmem>>, vector<256x8xf32>
    tpu.vector_store %arg4[%c0_6, %c0_7], %7 {strides = array<i32>} : memref<256x8xf32, #tpu.memory_space<vmem>>, vector<256x8xf32>,
    return
  }
  func.func @transform_0(%arg0: i32) -> (i32, i32) {
    %c0_i32 = arith.constant 0 : i32
    %c0_i32_0 = arith.constant 0 : i32
    return %arg0, %c0_i32 : i32, i32
  }
  func.func @transform_1(%arg0: i32) -> (i32, i32) {
    %c0_i32 = arith.constant 0 : i32
    %c0_i32_0 = arith.constant 0 : i32
    %c0_i32_1 = arith.constant 0 : i32
    return %c0_i32, %c0_i32_0 : i32, i32
  }
  func.func @transform_2(%arg0: i32) -> (i32, i32) {
    %c0_i32 = arith.constant 0 : i32
    %c0_i32_0 = arith.constant 0 : i32
    %c0_i32_1 = arith.constant 0 : i32
    return %c0_i32, %c0_i32_0 : i32, i32
  }
  func.func @transform_3(%arg0: i32) -> (i32, i32) {
    %c0_i32 = arith.constant 0 : i32
    %c0_i32_0 = arith.constant 0 : i32
    return %arg0, %c0_i32 : i32, i32
  }
}

module attributes {stable_mosaic.version = 11 : i64} {
  func.func @_fused_tail_kernel(%arg0: i32, %arg1: memref<1x9x9x32xf32, #tpu.memory_space<vmem>>, %arg2: memref<4x32x8xf32, #tpu.memory_space<vmem>>, %arg3: memref<1x8xf32, #tpu.memory_space<vmem>>, %arg4: memref<8x32xf32, #tpu.memory_space<vmem>>, %arg5: memref<1x32xf32, #tpu.memory_space<vmem>>, %arg6: memref<1x64x16xf32, #tpu.memory_space<vmem>>, %arg7: memref<16x32xf32, #tpu.memory_space<vmem>>, %arg8: memref<1x32xf32, #tpu.memory_space<vmem>>, %arg9: memref<1x64x32xf32, #tpu.memory_space<vmem>>) attributes {dimension_semantics = [#tpu.dimension_semantics<parallel>], iteration_bounds = array<i64: 2>, scalar_prefetch = 0 : i64, scratch_operands = 0 : i64, tpu.core_type = #tpu.core_type<tc>, window_params = [{transform_indices = @transform_0, window_bounds = array<i64: 1, 9, 9, 32>}, {pipeline_mode = #tpu.pipeline_mode<synchronous>, transform_indices = @transform_1, window_bounds = array<i64: 4, 32, 8>}, {pipeline_mode = #tpu.pipeline_mode<synchronous>, transform_indices = @transform_2, window_bounds = array<i64: 1, 8>}, {pipeline_mode = #tpu.pipeline_mode<synchronous>, transform_indices = @transform_3, window_bounds = array<i64: 8, 32>}, {pipeline_mode = #tpu.pipeline_mode<synchronous>, transform_indices = @transform_4, window_bounds = array<i64: 1, 32>}, {transform_indices = @transform_5, window_bounds = array<i64: 1, 64, 16>}, {pipeline_mode = #tpu.pipeline_mode<synchronous>, transform_indices = @transform_6, window_bounds = array<i64: 16, 32>}, {pipeline_mode = #tpu.pipeline_mode<synchronous>, transform_indices = @transform_7, window_bounds = array<i64: 1, 32>}, {transform_indices = @transform_8, window_bounds = array<i64: 1, 64, 32>}]} {
    %cst = arith.constant 0.000000e+00 : f32
    %0 = vector.broadcast %cst : f32 to vector<64x8xf32>
    %c0 = arith.constant 0 : index
    %c0_0 = arith.constant 0 : index
    %c0_1 = arith.constant 0 : index
    %c0_2 = arith.constant 0 : index
    %1 = vector.load %arg1[%c0, %c0_0, %c0_1, %c0_2] : memref<1x9x9x32xf32, #tpu.memory_space<vmem>>, vector<1x8x8x32xf32>
    %2 = vector.shape_cast %1 : vector<1x8x8x32xf32> to vector<8x8x32xf32>
    %3 = vector.shape_cast %2 : vector<8x8x32xf32> to vector<64x32xf32>
    %c0_3 = arith.constant 0 : index
    %c0_4 = arith.constant 0 : index
    %c0_5 = arith.constant 0 : index
    %4 = vector.load %arg2[%c0_3, %c0_4, %c0_5] : memref<4x32x8xf32, #tpu.memory_space<vmem>>, vector<1x32x8xf32>
    %5 = vector.shape_cast %4 : vector<1x32x8xf32> to vector<32x8xf32>
    %cst_6 = arith.constant dense<0.000000e+00> : vector<64x8xf32>
    %6 = tpu.matmul %3, %5, %cst_6 {dimension_numbers = #tpu.dot_dimension_numbers<[1], [0], [0], [1], [0, 0, 1, 1], [], []>} : vector<64x32xf32>, vector<32x8xf32>, vector<64x8xf32> -> vector<64x8xf32>
    %7 = arith.addf %0, %6 : vector<64x8xf32>
    %c0_7 = arith.constant 0 : index
    %c0_8 = arith.constant 0 : index
    %c1 = arith.constant 1 : index
    %c0_9 = arith.constant 0 : index
    %8 = vector.load %arg1[%c0_7, %c0_8, %c1, %c0_9] : memref<1x9x9x32xf32, #tpu.memory_space<vmem>>, vector<1x8x8x32xf32>
    %9 = vector.shape_cast %8 : vector<1x8x8x32xf32> to vector<8x8x32xf32>
    %10 = vector.shape_cast %9 : vector<8x8x32xf32> to vector<64x32xf32>
    %c1_10 = arith.constant 1 : index
    %c0_11 = arith.constant 0 : index
    %c0_12 = arith.constant 0 : index
    %11 = vector.load %arg2[%c1_10, %c0_11, %c0_12] : memref<4x32x8xf32, #tpu.memory_space<vmem>>, vector<1x32x8xf32>
    %12 = vector.shape_cast %11 : vector<1x32x8xf32> to vector<32x8xf32>
    %cst_13 = arith.constant dense<0.000000e+00> : vector<64x8xf32>
    %13 = tpu.matmul %10, %12, %cst_13 {dimension_numbers = #tpu.dot_dimension_numbers<[1], [0], [0], [1], [0, 0, 1, 1], [], []>} : vector<64x32xf32>, vector<32x8xf32>, vector<64x8xf32> -> vector<64x8xf32>
    %14 = arith.addf %7, %13 : vector<64x8xf32>
    %c0_14 = arith.constant 0 : index
    %c1_15 = arith.constant 1 : index
    %c0_16 = arith.constant 0 : index
    %c0_17 = arith.constant 0 : index
    %15 = vector.load %arg1[%c0_14, %c1_15, %c0_16, %c0_17] : memref<1x9x9x32xf32, #tpu.memory_space<vmem>>, vector<1x8x8x32xf32>
    %16 = vector.shape_cast %15 : vector<1x8x8x32xf32> to vector<8x8x32xf32>
    %17 = vector.shape_cast %16 : vector<8x8x32xf32> to vector<64x32xf32>
    %c2 = arith.constant 2 : index
    %c0_18 = arith.constant 0 : index
    %c0_19 = arith.constant 0 : index
    %18 = vector.load %arg2[%c2, %c0_18, %c0_19] : memref<4x32x8xf32, #tpu.memory_space<vmem>>, vector<1x32x8xf32>
    %19 = vector.shape_cast %18 : vector<1x32x8xf32> to vector<32x8xf32>
    %cst_20 = arith.constant dense<0.000000e+00> : vector<64x8xf32>
    %20 = tpu.matmul %17, %19, %cst_20 {dimension_numbers = #tpu.dot_dimension_numbers<[1], [0], [0], [1], [0, 0, 1, 1], [], []>} : vector<64x32xf32>, vector<32x8xf32>, vector<64x8xf32> -> vector<64x8xf32>
    %21 = arith.addf %14, %20 : vector<64x8xf32>
    %c0_21 = arith.constant 0 : index
    %c1_22 = arith.constant 1 : index
    %c1_23 = arith.constant 1 : index
    %c0_24 = arith.constant 0 : index
    %22 = vector.load %arg1[%c0_21, %c1_22, %c1_23, %c0_24] : memref<1x9x9x32xf32, #tpu.memory_space<vmem>>, vector<1x8x8x32xf32>
    %23 = vector.shape_cast %22 : vector<1x8x8x32xf32> to vector<8x8x32xf32>
    %24 = vector.shape_cast %23 : vector<8x8x32xf32> to vector<64x32xf32>
    %c3 = arith.constant 3 : index
    %c0_25 = arith.constant 0 : index
    %c0_26 = arith.constant 0 : index
    %25 = vector.load %arg2[%c3, %c0_25, %c0_26] : memref<4x32x8xf32, #tpu.memory_space<vmem>>, vector<1x32x8xf32>
    %26 = vector.shape_cast %25 : vector<1x32x8xf32> to vector<32x8xf32>
    %cst_27 = arith.constant dense<0.000000e+00> : vector<64x8xf32>
    %27 = tpu.matmul %24, %26, %cst_27 {dimension_numbers = #tpu.dot_dimension_numbers<[1], [0], [0], [1], [0, 0, 1, 1], [], []>} : vector<64x32xf32>, vector<32x8xf32>, vector<64x8xf32> -> vector<64x8xf32>
    %28 = arith.addf %21, %27 : vector<64x8xf32>
    %c0_28 = arith.constant 0 : index
    %c0_29 = arith.constant 0 : index
    %29 = vector.load %arg3[%c0_28, %c0_29] : memref<1x8xf32, #tpu.memory_space<vmem>>, vector<1x8xf32>
    %30 = vector.broadcast %29 : vector<1x8xf32> to vector<64x8xf32>
    %31 = arith.addf %28, %30 : vector<64x8xf32>
    %cst_30 = arith.constant 0.000000e+00 : f32
    %32 = vector.broadcast %cst_30 : f32 to vector<64x8xf32>
    %33 = arith.maximumf %31, %32 : vector<64x8xf32>
    %c0_31 = arith.constant 0 : index
    %c0_32 = arith.constant 0 : index
    %34 = vector.load %arg4[%c0_31, %c0_32] : memref<8x32xf32, #tpu.memory_space<vmem>>, vector<8x32xf32>
    %cst_33 = arith.constant dense<0.000000e+00> : vector<64x32xf32>
    %35 = tpu.matmul %33, %34, %cst_33 {dimension_numbers = #tpu.dot_dimension_numbers<[1], [0], [0], [1], [0, 0, 1, 1], [], []>} : vector<64x8xf32>, vector<8x32xf32>, vector<64x32xf32> -> vector<64x32xf32>
    %c0_34 = arith.constant 0 : index
    %c0_35 = arith.constant 0 : index
    %36 = vector.load %arg5[%c0_34, %c0_35] : memref<1x32xf32, #tpu.memory_space<vmem>>, vector<1x32xf32>
    %37 = vector.broadcast %36 : vector<1x32xf32> to vector<64x32xf32>
    %38 = arith.addf %35, %37 : vector<64x32xf32>
    %c0_36 = arith.constant 0 : index
    %c0_37 = arith.constant 0 : index
    %c0_38 = arith.constant 0 : index
    %39 = vector.load %arg6[%c0_36, %c0_37, %c0_38] : memref<1x64x16xf32, #tpu.memory_space<vmem>>, vector<1x64x16xf32>
    %40 = vector.shape_cast %39 : vector<1x64x16xf32> to vector<64x16xf32>
    %c0_39 = arith.constant 0 : index
    %c0_40 = arith.constant 0 : index
    %41 = vector.load %arg7[%c0_39, %c0_40] : memref<16x32xf32, #tpu.memory_space<vmem>>, vector<16x32xf32>
    %cst_41 = arith.constant dense<0.000000e+00> : vector<64x32xf32>
    %42 = tpu.matmul %40, %41, %cst_41 {dimension_numbers = #tpu.dot_dimension_numbers<[1], [0], [0], [1], [0, 0, 1, 1], [], []>} : vector<64x16xf32>, vector<16x32xf32>, vector<64x32xf32> -> vector<64x32xf32>
    %c0_42 = arith.constant 0 : index
    %c0_43 = arith.constant 0 : index
    %43 = vector.load %arg8[%c0_42, %c0_43] : memref<1x32xf32, #tpu.memory_space<vmem>>, vector<1x32xf32>
    %44 = vector.broadcast %43 : vector<1x32xf32> to vector<64x32xf32>
    %45 = arith.addf %42, %44 : vector<64x32xf32>
    %46 = arith.addf %38, %45 : vector<64x32xf32>
    %cst_44 = arith.constant 0.000000e+00 : f32
    %47 = vector.broadcast %cst_44 : f32 to vector<64x32xf32>
    %48 = arith.maximumf %46, %47 : vector<64x32xf32>
    %c0_45 = arith.constant 0 : index
    %c0_46 = arith.constant 0 : index
    %c0_47 = arith.constant 0 : index
    %49 = vector.load %arg9[%c0_45, %c0_46, %c0_47] : memref<1x64x32xf32, #tpu.memory_space<vmem>>, vector<1x64x32xf32>
    %50 = vector.shape_cast %49 : vector<1x64x32xf32> to vector<64x32xf32>
    %51 = vector.shape_cast %48 : vector<64x32xf32> to vector<1x64x32xf32>
    tpu.vector_store %arg9[%c0_45, %c0_46, %c0_47], %51 {strides = array<i32>} : memref<1x64x32xf32, #tpu.memory_space<vmem>>, vector<1x64x32xf32>,
    return
  }
  func.func @transform_0(%arg0: i32) -> (i32, i32, i32, i32) {
    %c0_i32 = arith.constant 0 : i32
    %c0_i32_0 = arith.constant 0 : i32
    %c0_i32_1 = arith.constant 0 : i32
    %c0_i32_2 = arith.constant 0 : i32
    return %arg0, %c0_i32, %c0_i32_0, %c0_i32_1 : i32, i32, i32, i32
  }
  func.func @transform_1(%arg0: i32) -> (i32, i32, i32) {
    %c0_i32 = arith.constant 0 : i32
    %c0_i32_0 = arith.constant 0 : i32
    %c0_i32_1 = arith.constant 0 : i32
    %c0_i32_2 = arith.constant 0 : i32
    return %c0_i32, %c0_i32_0, %c0_i32_1 : i32, i32, i32
  }
  func.func @transform_2(%arg0: i32) -> (i32, i32) {
    %c0_i32 = arith.constant 0 : i32
    %c0_i32_0 = arith.constant 0 : i32
    %c0_i32_1 = arith.constant 0 : i32
    return %c0_i32, %c0_i32_0 : i32, i32
  }
  func.func @transform_3(%arg0: i32) -> (i32, i32) {
    %c0_i32 = arith.constant 0 : i32
    %c0_i32_0 = arith.constant 0 : i32
    %c0_i32_1 = arith.constant 0 : i32
    return %c0_i32, %c0_i32_0 : i32, i32
  }
  func.func @transform_4(%arg0: i32) -> (i32, i32) {
    %c0_i32 = arith.constant 0 : i32
    %c0_i32_0 = arith.constant 0 : i32
    %c0_i32_1 = arith.constant 0 : i32
    return %c0_i32, %c0_i32_0 : i32, i32
  }
  func.func @transform_5(%arg0: i32) -> (i32, i32, i32) {
    %c0_i32 = arith.constant 0 : i32
    %c0_i32_0 = arith.constant 0 : i32
    %c0_i32_1 = arith.constant 0 : i32
    return %arg0, %c0_i32, %c0_i32_0 : i32, i32, i32
  }
  func.func @transform_6(%arg0: i32) -> (i32, i32) {
    %c0_i32 = arith.constant 0 : i32
    %c0_i32_0 = arith.constant 0 : i32
    %c0_i32_1 = arith.constant 0 : i32
    return %c0_i32, %c0_i32_0 : i32, i32
  }
  func.func @transform_7(%arg0: i32) -> (i32, i32) {
    %c0_i32 = arith.constant 0 : i32
    %c0_i32_0 = arith.constant 0 : i32
    %c0_i32_1 = arith.constant 0 : i32
    return %c0_i32, %c0_i32_0 : i32, i32
  }
  func.func @transform_8(%arg0: i32) -> (i32, i32, i32) {
    %c0_i32 = arith.constant 0 : i32
    %c0_i32_0 = arith.constant 0 : i32
    %c0_i32_1 = arith.constant 0 : i32
    return %arg0, %c0_i32, %c0_i32_0 : i32, i32, i32
  }
}

</mosaic_0001>

<llo_original>
// kernel: bottleneck_forward.2
$region0: #{bottleneck_forward.2}
  #allocation0 [shape = 'u32[]', space=smem, size = 0x4, offset = 0x4, fixed_abs, tag = 'smem constant byte address 0x4 - core index']
  #allocation1 [shape = 'u32[144,128]{1,0:T(1,128)}', space=vmem, size = 0x12000, scoped, tag = 'internal scratch']
  %s0 = inlined_call_operand.hbm [shape: f32[512,16], index: 0, kind: input, shape index: {}]
  %s1 = inlined_call_operand.vmem [shape: f32[16,8], index: 1, kind: input, shape index: {}]
  %s2 = inlined_call_operand.vmem [shape: f32[1,8], index: 2, kind: input, shape index: {}]
  %s3 = inlined_call_operand.vmem [shape: f32[512,8], index: 3, kind: output, shape index: {}]
  %s4 = sld [smem:[#allocation0]]
  $region49: #{bottleneck_forward.2} parent=0
    _
  %s6 = ssub.s32 1, %s4
  %s7 = scalar_select 0, %s6, %s4
  $region1: #{bottleneck_forward.2} parent=0
    #allocation2 [shape = 'u8[262144]{0}', space=vmem, size = 0x40000, scoped, tag = 'input window, operand 0']
    #allocation3 [shape = 's32[2]{0}', space=sflag, size = 0x8, scoped, tag = 'scoped memory for bottleneck_forward.2']
    %8 = vsyncpa [#allocation3], 0
    %s9 = scalar_lea.sflag [#allocation3], 1
    %10 = vsyncpa %s9, 0
    loop: start=0, step=1, limit=4
    $region2: #{bottleneck_forward.2} parent=1 // loop_pre_header
      _
    $region3: #{bottleneck_forward.2} parent=1 // loop_header
      %s12 = sphi 0, %s16
      %p13 = scmp.ge.s32.totalorder %s12, 4
      %s22 = sphi 0, %s24
      %s25 = sphi 0, %s22
      %s26 = sphi 0, %s25
      %s42 = sphi 0, %s26
      %s46 = sphi 0, %s46
      %s48 = sphi 0, %s46
      %s49 = sphi 0, %s48
      %s63 = sphi 0, %s49
      %s67 = sphi 0, %s67
      %s69 = sphi 0, %s67
      %s70 = sphi 0, %s69
      %s84 = sphi 0, %s70
      %s90 = sphi 0, %s92
      %s93 = sphi 0, %s90
      %s94 = sphi 0, %s93
      %s110 = sphi 0, %s94
    $region4: #{bottleneck_forward.2} parent=1 // loop_header_branch
      %15 = sbr.rel (%p13) target = $region8
    $region5: #{bottleneck_forward.2} parent=1 // loop_body
      %s17 = ssub.s32 %s12, 1
      %s18 = ssub.s32 %s12, 2
      %s19 = sadd.s32 %s12, 1
      %s20 = ssub.s32 %s12, %s19
      %p21 = scmp.eq.s32.totalorder %s20, 0
      %s23 = sadd.s32 %s22, 1
      %s24 = scalar_select %p21, %s22, %s23
      %p27 = pneg %p21
      %p28 = scmp.eq.s32.totalorder %s12, 1
      %p29 = por %p27, %p28
      %p30 = scmp.ne.s32.totalorder %s22, %s25
      %p31 = scmp.eq.s32.totalorder %s12, 0
      %p32 = por %p30, %p31
      %p33 = scmp.ne.s32.totalorder %s22, %s25
      %p34 = scmp.eq.s32.totalorder %s17, 1
      %p35 = por %p33, %p34
      %p36 = scmp.ne.s32.totalorder %s25, %s26
      %p37 = scmp.eq.s32.totalorder %s17, 0
      %p38 = por %p36, %p37
      %p39 = scmp.ne.s32.totalorder %s25, %s26
      %p40 = scmp.eq.s32.totalorder %s18, 1
      %p41 = por %p39, %p40
      %p43 = scmp.ne.s32.totalorder %s26, %s42
      %p44 = scmp.eq.s32.totalorder %s18, 0
      %p45 = por %p43, %p44
      %s47 = sadd.s32 %s46, 1
      %p50 = scmp.eq.s32.totalorder %s12, 1
      %p51 = scmp.ne.s32.totalorder %s46, %s48
      %p52 = scmp.eq.s32.totalorder %s12, 0
      %p53 = por %p51, %p52
      %p54 = scmp.ne.s32.totalorder %s46, %s48
      %p55 = scmp.eq.s32.totalorder %s17, 1
      %p56 = por %p54, %p55
      %p57 = scmp.ne.s32.totalorder %s48, %s49
      %p58 = scmp.eq.s32.totalorder %s17, 0
      %p59 = por %p57, %p58
      %p60 = scmp.ne.s32.totalorder %s48, %s49
      %p61 = scmp.eq.s32.totalorder %s18, 1
      %p62 = por %p60, %p61
      %p64 = scmp.ne.s32.totalorder %s49, %s63
      %p65 = scmp.eq.s32.totalorder %s18, 0
      %p66 = por %p64, %p65
      %s68 = sadd.s32 %s67, 1
      %p71 = scmp.eq.s32.totalorder %s12, 1
      %p72 = scmp.ne.s32.totalorder %s67, %s69
      %p73 = scmp.eq.s32.totalorder %s12, 0
      %p74 = por %p72, %p73
      %p75 = scmp.ne.s32.totalorder %s67, %s69
      %p76 = scmp.eq.s32.totalorder %s17, 1
      %p77 = por %p75, %p76
      %p78 = scmp.ne.s32.totalorder %s69, %s70
      %p79 = scmp.eq.s32.totalorder %s17, 0
      %p80 = por %p78, %p79
      %p81 = scmp.ne.s32.totalorder %s69, %s70
      %p82 = scmp.eq.s32.totalorder %s18, 1
      %p83 = por %p81, %p82
      %p85 = scmp.ne.s32.totalorder %s70, %s84
      %p86 = scmp.eq.s32.totalorder %s18, 0
      %p87 = por %p85, %p86
      %s88 = ssub.s32 %s12, %s19
      %p89 = scmp.eq.s32.totalorder %s88, 0
      %s91 = sadd.s32 %s90, 1
      %s92 = scalar_select %p89, %s90, %s91
      %p95 = pneg %p89
      %p96 = scmp.eq.s32.totalorder %s12, 1
      %p97 = por %p95, %p96
      %p98 = scmp.ne.s32.totalorder %s90, %s93
      %p99 = scmp.eq.s32.totalorder %s12, 0
      %p100 = por %p98, %p99
      %p101 = scmp.ne.s32.totalorder %s90, %s93
      %p102 = scmp.eq.s32.totalorder %s17, 1
      %p103 = por %p101, %p102
      %p104 = scmp.ne.s32.totalorder %s93, %s94
      %p105 = scmp.eq.s32.totalorder %s17, 0
      %p106 = por %p104, %p105
      %p107 = scmp.ne.s32.totalorder %s93, %s94
      %p108 = scmp.eq.s32.totalorder %s18, 1
      %p109 = por %p107, %p108
      %p111 = scmp.ne.s32.totalorder %s94, %s110
      %p112 = scmp.eq.s32.totalorder %s18, 0
      %p113 = por %p111, %p112
      %p114 = scmp.le.s32.totalorder 1, %s12
      %p115 = scmp.lt.s32.totalorder %s12, 3
      %p116 = pnand %p114, %p115
      %p117 = pneg %p116
      // Predicated region
      $region9: #{bottleneck_forward.2} parent=5 // pred_check
        _
      $region10: #{bottleneck_forward.2} parent=5 // pred_check_branch
        %119 = sbr.rel (%p116) target = $region12
      $region11: #{bottleneck_forward.2} parent=5 // pred_region
        %s120 = ssub.s32 %s12, 1
        // Predicated region
        $region13: #{bottleneck_forward.2} parent=11 // pred_check
          %p121 = pneg %p59
        $region14: #{bottleneck_forward.2} parent=11 // pred_check_branch
          %123 = sbr.rel (%p121) target = $region16
        $region15: #{bottleneck_forward.2} parent=11 // pred_region
          _
        $region16: #{bottleneck_forward.2} parent=11 // pred_fallthru
          _
        // Predicated region
        $region17: #{bottleneck_forward.2} parent=11 // pred_check
          %p124 = pneg %p80
        $region18: #{bottleneck_forward.2} parent=11 // pred_check_branch
          %126 = sbr.rel (%p124) target = $region20
        $region19: #{bottleneck_forward.2} parent=11 // pred_region
          _
        $region20: #{bottleneck_forward.2} parent=11 // pred_fallthru
          _
      $region12: #{bottleneck_forward.2} parent=5 // pred_fallthru
        _
      %p127 = scmp.lt.s32.totalorder %s12, 2
      // Predicated region
      $region21: #{bottleneck_forward.2} parent=5 // pred_check
        %p128 = pneg %p127
      $region22: #{bottleneck_forward.2} parent=5 // pred_check_branch
        %130 = sbr.rel (%p128) target = $region24
      $region23: #{bottleneck_forward.2} parent=5 // pred_region
        // Predicated region
        $region25: #{bottleneck_forward.2} parent=23 // pred_check
          %p131 = pneg %p32
        $region26: #{bottleneck_forward.2} parent=23 // pred_check_branch
          %133 = sbr.rel (%p131) target = $region28
        $region27: #{bottleneck_forward.2} parent=23 // pred_region
          %s134 = sand.u32 %s22, 1
          %s135 = scalar_lea.sflag [#allocation3], %s134
          %s136 = sand.u32 %s22, 1
          %s137 = smul.addr %s136, 256
          %s138 = scalar_lea.vmem [#allocation2], %s137
          %s139 = smul.u32 32, %s12
          %s141 = ssub.s32 4096, 4096
          %142 = vsyncadd %s135, %s141
          %s143 = smul.addr %s139, 128
          %s144 = scalar_lea.hbm %s0, %s143
          %s145 = sshll.u32 %s138, 4
          %s146 = int_to_ptr.vmem [resolvable:$true] %s145
          %151 = dma.hbm_to_vmem [thread:$0]  %s144, 4096, %s146, %s135, 128, 128, 8
        $region28: #{bottleneck_forward.2} parent=23 // pred_fallthru
          _
      $region24: #{bottleneck_forward.2} parent=5 // pred_fallthru
        _
      %p152 = scmp.le.s32.totalorder 1, %s12
      %p153 = scmp.lt.s32.totalorder %s12, 3
      %p154 = pnand %p152, %p153
      %p155 = pneg %p154
      // Predicated region
      $region29: #{bottleneck_forward.2} parent=5 // pred_check
        _
      $region30: #{bottleneck_forward.2} parent=5 // pred_check_branch
        %157 = sbr.rel (%p154) target = $region32
      $region31: #{bottleneck_forward.2} parent=5 // pred_region
        %s158 = ssub.s32 %s12, 1
        %s159 = sand.u32 %s25, 1
        %s160 = scalar_lea.sflag [#allocation3], %s159
        %s161 = sand.u32 %s25, 1
        %s162 = smul.addr %s161, 256
        %s163 = scalar_lea.vmem [#allocation2], %s162
        // Predicated region
        $region33: #{bottleneck_forward.2} parent=31 // pred_check
          %p164 = pneg %p38
        $region34: #{bottleneck_forward.2} parent=31 // pred_check_branch
          %166 = sbr.rel (%p164) target = $region36
        $region35: #{bottleneck_forward.2} parent=31 // pred_region
          %167 = dma.done %s160, 4096
        $region36: #{bottleneck_forward.2} parent=31 // pred_fallthru
          _
        %s168 = sand.u32 %s25, 1
        %s169 = scalar_lea.sflag [#allocation3], %s168
        %s170 = sand.u32 %s25, 1
        %s171 = smul.addr %s170, 256
        %s172 = scalar_lea.vmem [#allocation2], %s171
        %p173 = pneg %p38
        %p174 = pneg %p35
        %p175 = pneg %p59
        %p176 = pneg %p56
        %p177 = pneg %p80
        %p178 = pneg %p77
        %p179 = pneg %p106
        %p180 = pneg %p103
        %s181 = smul.u32 32, %s17
        %p182 = scmp.lt.s32.totalorder %s181, 63
        %s183 = scalar_select %p182, %s181, 63
        %s184 = smul.addr %s183, 8
        %s185 = scalar_lea.vmem %s3, %s184
        %s186 = smul.u32 32, %s17
        %s187 = smul.u32 32, %s17
        %p188 = scmp.lt.s32.totalorder %s187, 63
        %s189 = scalar_select %p188, %s187, 63
        %s190 = smul.addr %s189, 8
        %s191 = scalar_lea.vmem %s3, %s190
        %s192 = smul.u32 32, %s17
        %v193 = vld [vmem:[%s163] sm:$0xff]
        %v194 = vld [vmem:[%s163 + $0x8] sm:$0xff]
        %v195 = vld [vmem:[%s163 + $0x10] sm:$0xff]
        %v196 = vld [vmem:[%s163 + $0x18] sm:$0xff]
        %v197 = vld [vmem:[%s163 + $0x20] sm:$0xff]
        %v198 = vld [vmem:[%s163 + $0x28] sm:$0xff]
        %v199 = vld [vmem:[%s163 + $0x30] sm:$0xff]
        %v200 = vld [vmem:[%s163 + $0x38] sm:$0xff]
        %v201 = vld [vmem:[%s163 + $0x40] sm:$0xff]
        %v202 = vld [vmem:[%s163 + $0x48] sm:$0xff]
        %v203 = vld [vmem:[%s163 + $0x50] sm:$0xff]
        %v204 = vld [vmem:[%s163 + $0x58] sm:$0xff]
        %v205 = vld [vmem:[%s163 + $0x60] sm:$0xff]
        %v206 = vld [vmem:[%s163 + $0x68] sm:$0xff]
        %v207 = vld [vmem:[%s163 + $0x70] sm:$0xff]
        %v208 = vld [vmem:[%s163 + $0x78] sm:$0xff]
        %v209 = vld [vmem:[%s163 + $0x80] sm:$0xff]
        %v210 = vld [vmem:[%s163 + $0x88] sm:$0xff]
        %v211 = vld [vmem:[%s163 + $0x90] sm:$0xff]
        %v212 = vld [vmem:[%s163 + $0x98] sm:$0xff]
        %v213 = vld [vmem:[%s163 + $0xa0] sm:$0xff]
        %v214 = vld [vmem:[%s163 + $0xa8] sm:$0xff]
        %v215 = vld [vmem:[%s163 + $0xb0] sm:$0xff]
        %v216 = vld [vmem:[%s163 + $0xb8] sm:$0xff]
        %v217 = vld [vmem:[%s163 + $0xc0] sm:$0xff]
        %v218 = vld [vmem:[%s163 + $0xc8] sm:$0xff]
        %v219 = vld [vmem:[%s163 + $0xd0] sm:$0xff]
        %v220 = vld [vmem:[%s163 + $0xd8] sm:$0xff]
        %v221 = vld [vmem:[%s163 + $0xe0] sm:$0xff]
        %v222 = vld [vmem:[%s163 + $0xe8] sm:$0xff]
        %v223 = vld [vmem:[%s163 + $0xf0] sm:$0xff]
        %v224 = vld [vmem:[%s163 + $0xf8] sm:$0xff]
        %v225 = vld [vmem:[%s1] sm:$0xff]
        %v226 = vld [vmem:[%s1 + $0x8] sm:$0xff]
        %v227 = vld [vmem:[%s2] sm:$0x1]
        %v229 = vlaneseq
        %v230 = vshrl.u32 %v229, 7
        %v231 = vsub.s32 0, %v230
        %v232 = vrot.slane %v227, %v231
        %vm234 = vcmask 130048
        %v236 = vsel %vm234, %v193, 0
        %v239 = vsel %vm234, %v194, 0
        %v242 = vsel %vm234, %v195, 0
        %v245 = vsel %vm234, %v196, 0
        %v248 = vsel %vm234, %v197, 0
        %v251 = vsel %vm234, %v198, 0
        %v254 = vsel %vm234, %v199, 0
        %v257 = vsel %vm234, %v200, 0
        %v260 = vsel %vm234, %v201, 0
        %v263 = vsel %vm234, %v202, 0
        %v266 = vsel %vm234, %v203, 0
        %v269 = vsel %vm234, %v204, 0
        %v272 = vsel %vm234, %v205, 0
        %v275 = vsel %vm234, %v206, 0
        %v278 = vsel %vm234, %v207, 0
        %v281 = vsel %vm234, %v208, 0
        %v284 = vsel %vm234, %v209, 0
        %v287 = vsel %vm234, %v210, 0
        %v290 = vsel %vm234, %v211, 0
        %v293 = vsel %vm234, %v212, 0
        %v296 = vsel %vm234, %v213, 0
        %v299 = vsel %vm234, %v214, 0
        %v302 = vsel %vm234, %v215, 0
        %v305 = vsel %vm234, %v216, 0
        %v308 = vsel %vm234, %v217, 0
        %v311 = vsel %vm234, %v218, 0
        %v314 = vsel %vm234, %v219, 0
        %v317 = vsel %vm234, %v220, 0
        %v320 = vsel %vm234, %v221, 0
        %v323 = vsel %vm234, %v222, 0
        %v326 = vsel %vm234, %v223, 0
        %v329 = vsel %vm234, %v224, 0
        %331 = vmatprep.subr.mxu0 0.0
        %332 = vmatpush1.msra.mxu0 %v225
        %333 = vmatprep.subr.mxu0 0.0
        %334 = vmatpush1.msra.mxu0 %v226
        %335 = vmatprep.subr.mxu0 0.0
        %336 = vmatpush1.msra.mxu0 0.0
        %337 = vmatprep.subr.mxu0 0.0
        %338 = vmatpush1.msra.mxu0 0.0
        %339 = vmatprep.subr.mxu0 0.0
        %340 = vmatpush1.msra.mxu0 0.0
        %341 = vmatprep.subr.mxu0 0.0
        %342 = vmatpush1.msra.mxu0 0.0
        %343 = vmatprep.subr.mxu0 0.0
        %344 = vmatpush1.msra.mxu0 0.0
        %345 = vmatprep.subr.mxu0 0.0
        %346 = vmatpush1.msra.mxu0 0.0
        %347 = vmatprep.subr.mxu0 0.0
        %348 = vmatpush1.msra.mxu0 0.0
        %349 = vmatprep.subr.mxu0 0.0
        %350 = vmatpush1.msra.mxu0 0.0
        %351 = vmatprep.subr.mxu0 0.0
        %352 = vmatpush1.msra.mxu0 0.0
        %353 = vmatprep.subr.mxu0 0.0
        %354 = vmatpush1.msra.mxu0 0.0
        %355 = vmatprep.subr.mxu0 0.0
        %356 = vmatpush1.msra.mxu0 0.0
        %357 = vmatprep.subr.mxu0 0.0
        %358 = vmatpush1.msra.mxu0 0.0
        %359 = vmatprep.subr.mxu0 0.0
        %360 = vmatpush1.msra.mxu0 0.0
        %361 = vmatprep.subr.mxu0 0.0
        %362 = vmatpush1.msra.mxu0 0.0
        %363 = vmatprep.subr.mxu0 0.0
        %364 = vmatpush1.msra.mxu0 0.0
        %365 = vmatprep.subr.mxu0 0.0
        %366 = vmatpush1.msra.mxu0 0.0
        %367 = vmatprep.subr.mxu0 0.0
        %368 = vmatpush1.msra.mxu0 0.0
        %369 = vmatprep.subr.mxu0 0.0
        %370 = vmatpush1.msra.mxu0 0.0
        %371 = vmatprep.subr.mxu0 0.0
        %372 = vmatpush1.msra.mxu0 0.0
        %373 = vmatprep.subr.mxu0 0.0
        %374 = vmatpush1.msra.mxu0 0.0
        %375 = vmatprep.subr.mxu0 0.0
        %376 = vmatpush1.msra.mxu0 0.0
        %377 = vmatprep.subr.mxu0 0.0
        %378 = vmatpush1.msra.mxu0 0.0
        %379 = vmatprep.subr.mxu0 0.0
        %380 = vmatpush1.msra.mxu0 0.0
        %381 = vmatprep.subr.mxu0 0.0
        %382 = vmatpush1.msra.mxu0 0.0
        %383 = vmatprep.subr.mxu0 0.0
        %384 = vmatpush1.msra.mxu0 0.0
        %385 = vmatprep.subr.mxu0 0.0
        %386 = vmatpush1.msra.mxu0 0.0
        %387 = vmatprep.subr.mxu0 0.0
        %388 = vmatpush1.msra.mxu0 0.0
        %389 = vmatprep.subr.mxu0 0.0
        %390 = vmatpush1.msra.mxu0 0.0
        %391 = vmatprep.subr.mxu0 0.0
        %392 = vmatpush1.msra.mxu0 0.0
        %393 = vmatprep.subr.mxu0 0.0
        %394 = vmatpush1.msra.mxu0 0.0
        %395 = vmatprep.mubr.f32.mxu0 0.0
        %396 = vmatmul.mubr.f32.gmra.mrb[0].mxu0 %v236
        %v397 = vpop.f32.mrb[0].mxu0
        %v398 = vadd.f32 %v232, %v397
        %v399 = vpop.f32.mrb[0].mxu0
        %400 = vmatprep.mubr.f32.mxu0 0.0
        %401 = vmatmul.mubr.f32.gmra.mrb[0].mxu0 %v239
        %v402 = vpop.f32.mrb[0].mxu0
        %v403 = vadd.f32 %v232, %v402
        %v404 = vpop.f32.mrb[0].mxu0
        %405 = vmatprep.mubr.f32.mxu0 0.0
        %406 = vmatmul.mubr.f32.gmra.mrb[0].mxu0 %v242
        %v407 = vpop.f32.mrb[0].mxu0
        %v408 = vadd.f32 %v232, %v407
        %v409 = vpop.f32.mrb[0].mxu0
        %410 = vmatprep.mubr.f32.mxu0 0.0
        %411 = vmatmul.mubr.f32.gmra.mrb[0].mxu0 %v245
        %v412 = vpop.f32.mrb[0].mxu0
        %v413 = vadd.f32 %v232, %v412
        %v414 = vpop.f32.mrb[0].mxu0
        %415 = vmatprep.mubr.f32.mxu0 0.0
        %416 = vmatmul.mubr.f32.gmra.mrb[0].mxu0 %v248
        %v417 = vpop.f32.mrb[0].mxu0
        %v418 = vadd.f32 %v232, %v417
        %v419 = vpop.f32.mrb[0].mxu0
        %420 = vmatprep.mubr.f32.mxu0 0.0
        %421 = vmatmul.mubr.f32.gmra.mrb[0].mxu0 %v251
        %v422 = vpop.f32.mrb[0].mxu0
        %v423 = vadd.f32 %v232, %v422
        %v424 = vpop.f32.mrb[0].mxu0
        %425 = vmatprep.mubr.f32.mxu0 0.0
        %426 = vmatmul.mubr.f32.gmra.mrb[0].mxu0 %v254
        %v427 = vpop.f32.mrb[0].mxu0
        %v428 = vadd.f32 %v232, %v427
        %v429 = vpop.f32.mrb[0].mxu0
        %430 = vmatprep.mubr.f32.mxu0 0.0
        %431 = vmatmul.mubr.f32.gmra.mrb[0].mxu0 %v257
        %v432 = vpop.f32.mrb[0].mxu0
        %v433 = vadd.f32 %v232, %v432
        %v434 = vpop.f32.mrb[0].mxu0
        %435 = vmatprep.mubr.f32.mxu0 0.0
        %436 = vmatmul.mubr.f32.gmra.mrb[0].mxu0 %v260
        %v437 = vpop.f32.mrb[0].mxu0
        %v438 = vadd.f32 %v232, %v437
        %v439 = vpop.f32.mrb[0].mxu0
        %440 = vmatprep.mubr.f32.mxu0 0.0
        %441 = vmatmul.mubr.f32.gmra.mrb[0].mxu0 %v263
        %v442 = vpop.f32.mrb[0].mxu0
        %v443 = vadd.f32 %v232, %v442
        %v444 = vpop.f32.mrb[0].mxu0
        %445 = vmatprep.mubr.f32.mxu0 0.0
        %446 = vmatmul.mubr.f32.gmra.mrb[0].mxu0 %v266
        %v447 = vpop.f32.mrb[0].mxu0
        %v448 = vadd.f32 %v232, %v447
        %v449 = vpop.f32.mrb[0].mxu0
        %450 = vmatprep.mubr.f32.mxu0 0.0
        %451 = vmatmul.mubr.f32.gmra.mrb[0].mxu0 %v269
        %v452 = vpop.f32.mrb[0].mxu0
        %v453 = vadd.f32 %v232, %v452
        %v454 = vpop.f32.mrb[0].mxu0
        %455 = vmatprep.mubr.f32.mxu0 0.0
        %456 = vmatmul.mubr.f32.gmra.mrb[0].mxu0 %v272
        %v457 = vpop.f32.mrb[0].mxu0
        %v458 = vadd.f32 %v232, %v457
        %v459 = vpop.f32.mrb[0].mxu0
        %460 = vmatprep.mubr.f32.mxu0 0.0
        %461 = vmatmul.mubr.f32.gmra.mrb[0].mxu0 %v275
        %v462 = vpop.f32.mrb[0].mxu0
        %v463 = vadd.f32 %v232, %v462
        %v464 = vpop.f32.mrb[0].mxu0
        %465 = vmatprep.mubr.f32.mxu0 0.0
        %466 = vmatmul.mubr.f32.gmra.mrb[0].mxu0 %v278
        %v467 = vpop.f32.mrb[0].mxu0
        %v468 = vadd.f32 %v232, %v467
        %v469 = vpop.f32.mrb[0].mxu0
        %470 = vmatprep.mubr.f32.mxu0 0.0
        %471 = vmatmul.mubr.f32.gmra.mrb[0].mxu0 %v281
        %v472 = vpop.f32.mrb[0].mxu0
        %v473 = vadd.f32 %v232, %v472
        %v474 = vpop.f32.mrb[0].mxu0
        %475 = vmatprep.mubr.f32.mxu0 0.0
        %476 = vmatmul.mubr.f32.gmra.mrb[0].mxu0 %v284
        %v477 = vpop.f32.mrb[0].mxu0
        %v478 = vadd.f32 %v232, %v477
        %v479 = vpop.f32.mrb[0].mxu0
        %480 = vmatprep.mubr.f32.mxu0 0.0
        %481 = vmatmul.mubr.f32.gmra.mrb[0].mxu0 %v287
        %v482 = vpop.f32.mrb[0].mxu0
        %v483 = vadd.f32 %v232, %v482
        %v484 = vpop.f32.mrb[0].mxu0
        %485 = vmatprep.mubr.f32.mxu0 0.0
        %486 = vmatmul.mubr.f32.gmra.mrb[0].mxu0 %v290
        %v487 = vpop.f32.mrb[0].mxu0
        %v488 = vadd.f32 %v232, %v487
        %v489 = vpop.f32.mrb[0].mxu0
        %490 = vmatprep.mubr.f32.mxu0 0.0
        %491 = vmatmul.mubr.f32.gmra.mrb[0].mxu0 %v293
        %v492 = vpop.f32.mrb[0].mxu0
        %v493 = vadd.f32 %v232, %v492
        %v494 = vpop.f32.mrb[0].mxu0
        %495 = vmatprep.mubr.f32.mxu0 0.0
        %496 = vmatmul.mubr.f32.gmra.mrb[0].mxu0 %v296
        %v497 = vpop.f32.mrb[0].mxu0
        %v498 = vadd.f32 %v232, %v497
        %v499 = vpop.f32.mrb[0].mxu0
        %500 = vmatprep.mubr.f32.mxu0 0.0
        %501 = vmatmul.mubr.f32.gmra.mrb[0].mxu0 %v299
        %v502 = vpop.f32.mrb[0].mxu0
        %v503 = vadd.f32 %v232, %v502
        %v504 = vpop.f32.mrb[0].mxu0
        %505 = vmatprep.mubr.f32.mxu0 0.0
        %506 = vmatmul.mubr.f32.gmra.mrb[0].mxu0 %v302
        %v507 = vpop.f32.mrb[0].mxu0
        %v508 = vadd.f32 %v232, %v507
        %v509 = vpop.f32.mrb[0].mxu0
        %510 = vmatprep.mubr.f32.mxu0 0.0
        %511 = vmatmul.mubr.f32.gmra.mrb[0].mxu0 %v305
        %v512 = vpop.f32.mrb[0].mxu0
        %v513 = vadd.f32 %v232, %v512
        %v514 = vpop.f32.mrb[0].mxu0
        %515 = vmatprep.mubr.f32.mxu0 0.0
        %516 = vmatmul.mubr.f32.gmra.mrb[0].mxu0 %v308
        %v517 = vpop.f32.mrb[0].mxu0
        %v518 = vadd.f32 %v232, %v517
        %v519 = vpop.f32.mrb[0].mxu0
        %520 = vmatprep.mubr.f32.mxu0 0.0
        %521 = vmatmul.mubr.f32.gmra.mrb[0].mxu0 %v311
        %v522 = vpop.f32.mrb[0].mxu0
        %v523 = vadd.f32 %v232, %v522
        %v524 = vpop.f32.mrb[0].mxu0
        %525 = vmatprep.mubr.f32.mxu0 0.0
        %526 = vmatmul.mubr.f32.gmra.mrb[0].mxu0 %v314
        %v527 = vpop.f32.mrb[0].mxu0
        %v528 = vadd.f32 %v232, %v527
        %v529 = vpop.f32.mrb[0].mxu0
        %530 = vmatprep.mubr.f32.mxu0 0.0
        %531 = vmatmul.mubr.f32.gmra.mrb[0].mxu0 %v317
        %v532 = vpop.f32.mrb[0].mxu0
        %v533 = vadd.f32 %v232, %v532
        %v534 = vpop.f32.mrb[0].mxu0
        %535 = vmatprep.mubr.f32.mxu0 0.0
        %536 = vmatmul.mubr.f32.gmra.mrb[0].mxu0 %v320
        %v537 = vpop.f32.mrb[0].mxu0
        %v538 = vadd.f32 %v232, %v537
        %v539 = vpop.f32.mrb[0].mxu0
        %540 = vmatprep.mubr.f32.mxu0 0.0
        %541 = vmatmul.mubr.f32.gmra.mrb[0].mxu0 %v323
        %v542 = vpop.f32.mrb[0].mxu0
        %v543 = vadd.f32 %v232, %v542
        %v544 = vpop.f32.mrb[0].mxu0
        %545 = vmatprep.mubr.f32.mxu0 0.0
        %546 = vmatmul.mubr.f32.gmra.mrb[0].mxu0 %v326
        %v547 = vpop.f32.mrb[0].mxu0
        %v548 = vadd.f32 %v232, %v547
        %v549 = vpop.f32.mrb[0].mxu0
        %550 = vmatprep.mubr.f32.mxu0 0.0
        %551 = vmatmul.mubr.f32.gmra.mrb[0].mxu0 %v329
        %v552 = vpop.f32.mrb[0].mxu0
        %v553 = vadd.f32 %v232, %v552
        %v554 = vpop.f32.mrb[0].mxu0
        %555 = vdwg.mxu0
        %v556 = vmax.f32 %v398, 0.0
        %v557 = vmax.f32 %v403, 0.0
        %v558 = vmax.f32 %v408, 0.0
        %v559 = vmax.f32 %v413, 0.0
        %v560 = vmax.f32 %v418, 0.0
        %v561 = vmax.f32 %v423, 0.0
        %v562 = vmax.f32 %v428, 0.0
        %v563 = vmax.f32 %v433, 0.0
        %v564 = vmax.f32 %v438, 0.0
        %v565 = vmax.f32 %v443, 0.0
        %v566 = vmax.f32 %v448, 0.0
        %v567 = vmax.f32 %v453, 0.0
        %v568 = vmax.f32 %v458, 0.0
        %v569 = vmax.f32 %v463, 0.0
        %v570 = vmax.f32 %v468, 0.0
        %v571 = vmax.f32 %v473, 0.0
        %v572 = vmax.f32 %v478, 0.0
        %v573 = vmax.f32 %v483, 0.0
        %v574 = vmax.f32 %v488, 0.0
        %v575 = vmax.f32 %v493, 0.0
        %v576 = vmax.f32 %v498, 0.0
        %v577 = vmax.f32 %v503, 0.0
        %v578 = vmax.f32 %v508, 0.0
        %v579 = vmax.f32 %v513, 0.0
        %v580 = vmax.f32 %v518, 0.0
        %v581 = vmax.f32 %v523, 0.0
        %v582 = vmax.f32 %v528, 0.0
        %v583 = vmax.f32 %v533, 0.0
        %v584 = vmax.f32 %v538, 0.0
        %v585 = vmax.f32 %v543, 0.0
        %v586 = vmax.f32 %v548, 0.0
        %v587 = vmax.f32 %v553, 0.0
        %vm588 = vcmask 64512
        %589 = vst.msk [vmem:[%s191] sm:$0xff] %vm588, %v556
        %590 = vst.msk [vmem:[%s191 + $0x8] sm:$0xff] %vm588, %v557
        %591 = vst.msk [vmem:[%s191 + $0x10] sm:$0xff] %vm588, %v558
        %592 = vst.msk [vmem:[%s191 + $0x18] sm:$0xff] %vm588, %v559
        %593 = vst.msk [vmem:[%s191 + $0x20] sm:$0xff] %vm588, %v560
        %594 = vst.msk [vmem:[%s191 + $0x28] sm:$0xff] %vm588, %v561
        %595 = vst.msk [vmem:[%s191 + $0x30] sm:$0xff] %vm588, %v562
        %596 = vst.msk [vmem:[%s191 + $0x38] sm:$0xff] %vm588, %v563
        %597 = vst.msk [vmem:[%s191 + $0x40] sm:$0xff] %vm588, %v564
        %598 = vst.msk [vmem:[%s191 + $0x48] sm:$0xff] %vm588, %v565
        %599 = vst.msk [vmem:[%s191 + $0x50] sm:$0xff] %vm588, %v566
        %600 = vst.msk [vmem:[%s191 + $0x58] sm:$0xff] %vm588, %v567
        %601 = vst.msk [vmem:[%s191 + $0x60] sm:$0xff] %vm588, %v568
        %602 = vst.msk [vmem:[%s191 + $0x68] sm:$0xff] %vm588, %v569
        %603 = vst.msk [vmem:[%s191 + $0x70] sm:$0xff] %vm588, %v570
        %604 = vst.msk [vmem:[%s191 + $0x78] sm:$0xff] %vm588, %v571
        %605 = vst.msk [vmem:[%s191 + $0x80] sm:$0xff] %vm588, %v572
        %606 = vst.msk [vmem:[%s191 + $0x88] sm:$0xff] %vm588, %v573
        %607 = vst.msk [vmem:[%s191 + $0x90] sm:$0xff] %vm588, %v574
        %608 = vst.msk [vmem:[%s191 + $0x98] sm:$0xff] %vm588, %v575
        %609 = vst.msk [vmem:[%s191 + $0xa0] sm:$0xff] %vm588, %v576
        %610 = vst.msk [vmem:[%s191 + $0xa8] sm:$0xff] %vm588, %v577
        %611 = vst.msk [vmem:[%s191 + $0xb0] sm:$0xff] %vm588, %v578
        %612 = vst.msk [vmem:[%s191 + $0xb8] sm:$0xff] %vm588, %v579
        %613 = vst.msk [vmem:[%s191 + $0xc0] sm:$0xff] %vm588, %v580
        %614 = vst.msk [vmem:[%s191 + $0xc8] sm:$0xff] %vm588, %v581
        %615 = vst.msk [vmem:[%s191 + $0xd0] sm:$0xff] %vm588, %v582
        %616 = vst.msk [vmem:[%s191 + $0xd8] sm:$0xff] %vm588, %v583
        %617 = vst.msk [vmem:[%s191 + $0xe0] sm:$0xff] %vm588, %v584
        %618 = vst.msk [vmem:[%s191 + $0xe8] sm:$0xff] %vm588, %v585
        %619 = vst.msk [vmem:[%s191 + $0xf0] sm:$0xff] %vm588, %v586
        %620 = vst.msk [vmem:[%s191 + $0xf8] sm:$0xff] %vm588, %v587
        %s621 = smul.u32 32, %s17
        %p622 = scmp.lt.s32.totalorder %s621, 63
        %s623 = scalar_select %p622, %s621, 63
        %s624 = smul.addr %s623, 8
        %s625 = scalar_lea.vmem %s3, %s624
        // Predicated region
        $region37: #{bottleneck_forward.2} parent=31 // pred_check
          %p626 = pneg %p103
        $region38: #{bottleneck_forward.2} parent=31 // pred_check_branch
          %628 = sbr.rel (%p626) target = $region40
        $region39: #{bottleneck_forward.2} parent=31 // pred_region
          %s629 = smul.u32 32, %s17
        $region40: #{bottleneck_forward.2} parent=31 // pred_fallthru
          _
      $region32: #{bottleneck_forward.2} parent=5 // pred_fallthru
        _
      %p630 = scmp.le.s32.totalorder 2, %s12
      // Predicated region
      $region41: #{bottleneck_forward.2} parent=5 // pred_check
        %p631 = pneg %p630
      $region42: #{bottleneck_forward.2} parent=5 // pred_check_branch
        %633 = sbr.rel (%p631) target = $region44
      $region43: #{bottleneck_forward.2} parent=5 // pred_region
        %s634 = ssub.s32 %s12, 2
        // Predicated region
        $region45: #{bottleneck_forward.2} parent=43 // pred_check
          %p635 = pneg %p109
        $region46: #{bottleneck_forward.2} parent=43 // pred_check_branch
          %637 = sbr.rel (%p635) target = $region48
        $region47: #{bottleneck_forward.2} parent=43 // pred_region
          %s638 = smul.u32 32, %s18
          %p639 = scmp.lt.s32.totalorder %s638, 63
          %s640 = scalar_select %p639, %s638, 63
          %s641 = smul.addr %s640, 8
          %s642 = scalar_lea.vmem %s3, %s641
        $region48: #{bottleneck_forward.2} parent=43 // pred_fallthru
          _
      $region44: #{bottleneck_forward.2} parent=5 // pred_fallthru
        _
    $region6: #{bottleneck_forward.2} parent=1 // loop_footer
      %s16 = sadd.s32 1, %s12
    $region7: #{bottleneck_forward.2} parent=1 // loop_footer_branch
      %11 = sbr.rel target = $region3
    $region8: #{bottleneck_forward.2} parent=1 // loop_exit
      _
    %643 = vsyncpa [#allocation3], 1
    %s644 = scalar_lea.sflag [#allocation3], 1
    %645 = vsyncpa %s644, 1

// kernel: bottleneck_forward.3
$region0: #{bottleneck_forward.3}
  #allocation0 [shape = 'u32[]', space=smem, size = 0x4, offset = 0x4, fixed_abs, tag = 'smem constant byte address 0x4 - core index']
  #allocation1 [shape = 'u32[144,128]{1,0:T(1,128)}', space=vmem, size = 0x12000, scoped, tag = 'internal scratch']
  %s0 = inlined_call_operand.vmem [shape: f32[2,9,9,32], index: 0, kind: input, shape index: {}]
  %s1 = inlined_call_operand.vmem [shape: f32[4,32,8], index: 1, kind: input, shape index: {}]
  %s2 = inlined_call_operand.vmem [shape: f32[1,8], index: 2, kind: input, shape index: {}]
  %s3 = inlined_call_operand.vmem [shape: f32[8,32], index: 3, kind: input, shape index: {}]
  %s4 = inlined_call_operand.vmem [shape: f32[1,32], index: 4, kind: input, shape index: {}]
  %s5 = inlined_call_operand.vmem [shape: f32[2,64,16], index: 5, kind: input, shape index: {}]
  %s6 = inlined_call_operand.vmem [shape: f32[16,32], index: 6, kind: input, shape index: {}]
  %s7 = inlined_call_operand.vmem [shape: f32[1,32], index: 7, kind: input, shape index: {}]
  %s8 = inlined_call_operand.hbm [shape: f32[2,64,32], index: 8, kind: output, shape index: {}]
  %s9 = sld [smem:[#allocation0]]
  $region65: #{bottleneck_forward.3} parent=0
    _
  %s11 = ssub.s32 1, %s9
  %s12 = scalar_select 0, %s11, %s9
  $region1: #{bottleneck_forward.3} parent=0
    #allocation2 [shape = 'u8[65536]{0}', space=vmem, size = 0x10000, scoped, tag = 'output window, operand 0']
    #allocation3 [shape = 's32[2]{0}', space=sflag, size = 0x8, scoped, tag = 'scoped memory for bottleneck_forward.3']
    %13 = vsyncpa [#allocation3], 0
    %s14 = scalar_lea.sflag [#allocation3], 1
    %15 = vsyncpa %s14, 0
    loop: start=0, step=1, limit=4
    $region2: #{bottleneck_forward.3} parent=1 // loop_pre_header
      _
    $region3: #{bottleneck_forward.3} parent=1 // loop_header
      %s17 = sphi 0, %s21
      %p18 = scmp.ge.s32.totalorder %s17, 4
      %s27 = sphi 0, %s29
      %s30 = sphi 0, %s27
      %s31 = sphi 0, %s30
      %s47 = sphi 0, %s31
      %s51 = sphi 0, %s51
      %s53 = sphi 0, %s51
      %s54 = sphi 0, %s53
      %s68 = sphi 0, %s54
      %s72 = sphi 0, %s72
      %s74 = sphi 0, %s72
      %s75 = sphi 0, %s74
      %s89 = sphi 0, %s75
      %s93 = sphi 0, %s93
      %s95 = sphi 0, %s93
      %s96 = sphi 0, %s95
      %s110 = sphi 0, %s96
      %s114 = sphi 0, %s114
      %s116 = sphi 0, %s114
      %s117 = sphi 0, %s116
      %s131 = sphi 0, %s117
      %s137 = sphi 0, %s139
      %s140 = sphi 0, %s137
      %s141 = sphi 0, %s140
      %s157 = sphi 0, %s141
      %s161 = sphi 0, %s161
      %s163 = sphi 0, %s161
      %s164 = sphi 0, %s163
      %s178 = sphi 0, %s164
      %s182 = sphi 0, %s182
      %s184 = sphi 0, %s182
      %s185 = sphi 0, %s184
      %s199 = sphi 0, %s185
      %s205 = sphi 0, %s207
      %s208 = sphi 0, %s205
      %s209 = sphi 0, %s208
      %s225 = sphi 0, %s209
    $region4: #{bottleneck_forward.3} parent=1 // loop_header_branch
      %20 = sbr.rel (%p18) target = $region8
    $region5: #{bottleneck_forward.3} parent=1 // loop_body
      %s22 = ssub.s32 %s17, 1
      %s23 = ssub.s32 %s17, 2
      %s24 = sadd.s32 %s17, 1
      %s25 = ssub.s32 %s17, %s24
      %p26 = scmp.eq.s32.totalorder %s25, 0
      %s28 = sadd.s32 %s27, 1
      %s29 = scalar_select %p26, %s27, %s28
      %p32 = pneg %p26
      %p33 = scmp.eq.s32.totalorder %s17, 1
      %p34 = por %p32, %p33
      %p35 = scmp.ne.s32.totalorder %s27, %s30
      %p36 = scmp.eq.s32.totalorder %s17, 0
      %p37 = por %p35, %p36
      %p38 = scmp.ne.s32.totalorder %s27, %s30
      %p39 = scmp.eq.s32.totalorder %s22, 1
      %p40 = por %p38, %p39
      %p41 = scmp.ne.s32.totalorder %s30, %s31
      %p42 = scmp.eq.s32.totalorder %s22, 0
      %p43 = por %p41, %p42
      %p44 = scmp.ne.s32.totalorder %s30, %s31
      %p45 = scmp.eq.s32.totalorder %s23, 1
      %p46 = por %p44, %p45
      %p48 = scmp.ne.s32.totalorder %s31, %s47
      %p49 = scmp.eq.s32.totalorder %s23, 0
      %p50 = por %p48, %p49
      %s52 = sadd.s32 %s51, 1
      %p55 = scmp.eq.s32.totalorder %s17, 1
      %p56 = scmp.ne.s32.totalorder %s51, %s53
      %p57 = scmp.eq.s32.totalorder %s17, 0
      %p58 = por %p56, %p57
      %p59 = scmp.ne.s32.totalorder %s51, %s53
      %p60 = scmp.eq.s32.totalorder %s22, 1
      %p61 = por %p59, %p60
      %p62 = scmp.ne.s32.totalorder %s53, %s54
      %p63 = scmp.eq.s32.totalorder %s22, 0
      %p64 = por %p62, %p63
      %p65 = scmp.ne.s32.totalorder %s53, %s54
      %p66 = scmp.eq.s32.totalorder %s23, 1
      %p67 = por %p65, %p66
      %p69 = scmp.ne.s32.totalorder %s54, %s68
      %p70 = scmp.eq.s32.totalorder %s23, 0
      %p71 = por %p69, %p70
      %s73 = sadd.s32 %s72, 1
      %p76 = scmp.eq.s32.totalorder %s17, 1
      %p77 = scmp.ne.s32.totalorder %s72, %s74
      %p78 = scmp.eq.s32.totalorder %s17, 0
      %p79 = por %p77, %p78
      %p80 = scmp.ne.s32.totalorder %s72, %s74
      %p81 = scmp.eq.s32.totalorder %s22, 1
      %p82 = por %p80, %p81
      %p83 = scmp.ne.s32.totalorder %s74, %s75
      %p84 = scmp.eq.s32.totalorder %s22, 0
      %p85 = por %p83, %p84
      %p86 = scmp.ne.s32.totalorder %s74, %s75
      %p87 = scmp.eq.s32.totalorder %s23, 1
      %p88 = por %p86, %p87
      %p90 = scmp.ne.s32.totalorder %s75, %s89
      %p91 = scmp.eq.s32.totalorder %s23, 0
      %p92 = por %p90, %p91
      %s94 = sadd.s32 %s93, 1
      %p97 = scmp.eq.s32.totalorder %s17, 1
      %p98 = scmp.ne.s32.totalorder %s93, %s95
      %p99 = scmp.eq.s32.totalorder %s17, 0
      %p100 = por %p98, %p99
      %p101 = scmp.ne.s32.totalorder %s93, %s95
      %p102 = scmp.eq.s32.totalorder %s22, 1
      %p103 = por %p101, %p102
      %p104 = scmp.ne.s32.totalorder %s95, %s96
      %p105 = scmp.eq.s32.totalorder %s22, 0
      %p106 = por %p104, %p105
      %p107 = scmp.ne.s32.totalorder %s95, %s96
      %p108 = scmp.eq.s32.totalorder %s23, 1
      %p109 = por %p107, %p108
      %p111 = scmp.ne.s32.totalorder %s96, %s110
      %p112 = scmp.eq.s32.totalorder %s23, 0
      %p113 = por %p111, %p112
      %s115 = sadd.s32 %s114, 1
      %p118 = scmp.eq.s32.totalorder %s17, 1
      %p119 = scmp.ne.s32.totalorder %s114, %s116
      %p120 = scmp.eq.s32.totalorder %s17, 0
      %p121 = por %p119, %p120
      %p122 = scmp.ne.s32.totalorder %s114, %s116
      %p123 = scmp.eq.s32.totalorder %s22, 1
      %p124 = por %p122, %p123
      %p125 = scmp.ne.s32.totalorder %s116, %s117
      %p126 = scmp.eq.s32.totalorder %s22, 0
      %p127 = por %p125, %p126
      %p128 = scmp.ne.s32.totalorder %s116, %s117
      %p129 = scmp.eq.s32.totalorder %s23, 1
      %p130 = por %p128, %p129
      %p132 = scmp.ne.s32.totalorder %s117, %s131
      %p133 = scmp.eq.s32.totalorder %s23, 0
      %p134 = por %p132, %p133
      %s135 = ssub.s32 %s17, %s24
      %p136 = scmp.eq.s32.totalorder %s135, 0
      %s138 = sadd.s32 %s137, 1
      %s139 = scalar_select %p136, %s137, %s138
      %p142 = pneg %p136
      %p143 = scmp.eq.s32.totalorder %s17, 1
      %p144 = por %p142, %p143
      %p145 = scmp.ne.s32.totalorder %s137, %s140
      %p146 = scmp.eq.s32.totalorder %s17, 0
      %p147 = por %p145, %p146
      %p148 = scmp.ne.s32.totalorder %s137, %s140
      %p149 = scmp.eq.s32.totalorder %s22, 1
      %p150 = por %p148, %p149
      %p151 = scmp.ne.s32.totalorder %s140, %s141
      %p152 = scmp.eq.s32.totalorder %s22, 0
      %p153 = por %p151, %p152
      %p154 = scmp.ne.s32.totalorder %s140, %s141
      %p155 = scmp.eq.s32.totalorder %s23, 1
      %p156 = por %p154, %p155
      %p158 = scmp.ne.s32.totalorder %s141, %s157
      %p159 = scmp.eq.s32.totalorder %s23, 0
      %p160 = por %p158, %p159
      %s162 = sadd.s32 %s161, 1
      %p165 = scmp.eq.s32.totalorder %s17, 1
      %p166 = scmp.ne.s32.totalorder %s161, %s163
      %p167 = scmp.eq.s32.totalorder %s17, 0
      %p168 = por %p166, %p167
      %p169 = scmp.ne.s32.totalorder %s161, %s163
      %p170 = scmp.eq.s32.totalorder %s22, 1
      %p171 = por %p169, %p170
      %p172 = scmp.ne.s32.totalorder %s163, %s164
      %p173 = scmp.eq.s32.totalorder %s22, 0
      %p174 = por %p172, %p173
      %p175 = scmp.ne.s32.totalorder %s163, %s164
      %p176 = scmp.eq.s32.totalorder %s23, 1
      %p177 = por %p175, %p176
      %p179 = scmp.ne.s32.totalorder %s164, %s178
      %p180 = scmp.eq.s32.totalorder %s23, 0
      %p181 = por %p179, %p180
      %s183 = sadd.s32 %s182, 1
      %p186 = scmp.eq.s32.totalorder %s17, 1
      %p187 = scmp.ne.s32.totalorder %s182, %s184
      %p188 = scmp.eq.s32.totalorder %s17, 0
      %p189 = por %p187, %p188
      %p190 = scmp.ne.s32.totalorder %s182, %s184
      %p191 = scmp.eq.s32.totalorder %s22, 1
      %p192 = por %p190, %p191
      %p193 = scmp.ne.s32.totalorder %s184, %s185
      %p194 = scmp.eq.s32.totalorder %s22, 0
      %p195 = por %p193, %p194
      %p196 = scmp.ne.s32.totalorder %s184, %s185
      %p197 = scmp.eq.s32.totalorder %s23, 1
      %p198 = por %p196, %p197
      %p200 = scmp.ne.s32.totalorder %s185, %s199
      %p201 = scmp.eq.s32.totalorder %s23, 0
      %p202 = por %p200, %p201
      %s203 = ssub.s32 %s17, %s24
      %p204 = scmp.eq.s32.totalorder %s203, 0
      %s206 = sadd.s32 %s205, 1
      %s207 = scalar_select %p204, %s205, %s206
      %p210 = pneg %p204
      %p211 = scmp.eq.s32.totalorder %s17, 1
      %p212 = por %p210, %p211
      %p213 = scmp.ne.s32.totalorder %s205, %s208
      %p214 = scmp.eq.s32.totalorder %s17, 0
      %p215 = por %p213, %p214
      %p216 = scmp.ne.s32.totalorder %s205, %s208
      %p217 = scmp.eq.s32.totalorder %s22, 1
      %p218 = por %p216, %p217
      %p219 = scmp.ne.s32.totalorder %s208, %s209
      %p220 = scmp.eq.s32.totalorder %s22, 0
      %p221 = por %p219, %p220
      %p222 = scmp.ne.s32.totalorder %s208, %s209
      %p223 = scmp.eq.s32.totalorder %s23, 1
      %p224 = por %p222, %p223
      %p226 = scmp.ne.s32.totalorder %s209, %s225
      %p227 = scmp.eq.s32.totalorder %s23, 0
      %p228 = por %p226, %p227
      %p229 = scmp.le.s32.totalorder 1, %s17
      %p230 = scmp.lt.s32.totalorder %s17, 3
      %p231 = pnand %p229, %p230
      %p232 = pneg %p231
      // Predicated region
      $region9: #{bottleneck_forward.3} parent=5 // pred_check
        _
      $region10: #{bottleneck_forward.3} parent=5 // pred_check_branch
        %234 = sbr.rel (%p231) target = $region12
      $region11: #{bottleneck_forward.3} parent=5 // pred_region
        %s235 = ssub.s32 %s17, 1
        // Predicated region
        $region13: #{bottleneck_forward.3} parent=11 // pred_check
          %p236 = pneg %p64
        $region14: #{bottleneck_forward.3} parent=11 // pred_check_branch
          %238 = sbr.rel (%p236) target = $region16
        $region15: #{bottleneck_forward.3} parent=11 // pred_region
          _
        $region16: #{bottleneck_forward.3} parent=11 // pred_fallthru
          _
        // Predicated region
        $region17: #{bottleneck_forward.3} parent=11 // pred_check
          %p239 = pneg %p85
        $region18: #{bottleneck_forward.3} parent=11 // pred_check_branch
          %241 = sbr.rel (%p239) target = $region20
        $region19: #{bottleneck_forward.3} parent=11 // pred_region
          _
        $region20: #{bottleneck_forward.3} parent=11 // pred_fallthru
          _
        // Predicated region
        $region21: #{bottleneck_forward.3} parent=11 // pred_check
          %p242 = pneg %p106
        $region22: #{bottleneck_forward.3} parent=11 // pred_check_branch
          %244 = sbr.rel (%p242) target = $region24
        $region23: #{bottleneck_forward.3} parent=11 // pred_region
          _
        $region24: #{bottleneck_forward.3} parent=11 // pred_fallthru
          _
        // Predicated region
        $region25: #{bottleneck_forward.3} parent=11 // pred_check
          %p245 = pneg %p127
        $region26: #{bottleneck_forward.3} parent=11 // pred_check_branch
          %247 = sbr.rel (%p245) target = $region28
        $region27: #{bottleneck_forward.3} parent=11 // pred_region
          _
        $region28: #{bottleneck_forward.3} parent=11 // pred_fallthru
          _
        // Predicated region
        $region29: #{bottleneck_forward.3} parent=11 // pred_check
          %p248 = pneg %p174
        $region30: #{bottleneck_forward.3} parent=11 // pred_check_branch
          %250 = sbr.rel (%p248) target = $region32
        $region31: #{bottleneck_forward.3} parent=11 // pred_region
          _
        $region32: #{bottleneck_forward.3} parent=11 // pred_fallthru
          _
        // Predicated region
        $region33: #{bottleneck_forward.3} parent=11 // pred_check
          %p251 = pneg %p195
        $region34: #{bottleneck_forward.3} parent=11 // pred_check_branch
          %253 = sbr.rel (%p251) target = $region36
        $region35: #{bottleneck_forward.3} parent=11 // pred_region
          _
        $region36: #{bottleneck_forward.3} parent=11 // pred_fallthru
          _
      $region12: #{bottleneck_forward.3} parent=5 // pred_fallthru
        _
      %p254 = scmp.lt.s32.totalorder %s17, 2
      // Predicated region
      $region37: #{bottleneck_forward.3} parent=5 // pred_check
        %p255 = pneg %p254
      $region38: #{bottleneck_forward.3} parent=5 // pred_check_branch
        %257 = sbr.rel (%p255) target = $region40
      $region39: #{bottleneck_forward.3} parent=5 // pred_region
        // Predicated region
        $region41: #{bottleneck_forward.3} parent=39 // pred_check
          %p258 = pneg %p37
        $region42: #{bottleneck_forward.3} parent=39 // pred_check_branch
          %260 = sbr.rel (%p258) target = $region44
        $region43: #{bottleneck_forward.3} parent=39 // pred_region
          %p261 = scmp.lt.s32.totalorder %s17, 1
          %s262 = scalar_select %p261, %s17, 1
          %s263 = smul.addr %s262, 18
          %s264 = smul.addr %s263, 8
          %s265 = scalar_lea.vmem %s0, %s264
        $region44: #{bottleneck_forward.3} parent=39 // pred_fallthru
          _
        // Predicated region
        $region45: #{bottleneck_forward.3} parent=39 // pred_check
          %p266 = pneg %p147
        $region46: #{bottleneck_forward.3} parent=39 // pred_check_branch
          %268 = sbr.rel (%p266) target = $region48
        $region47: #{bottleneck_forward.3} parent=39 // pred_region
          %p269 = scmp.lt.s32.totalorder %s17, 1
          %s270 = scalar_select %p269, %s17, 1
          %s271 = smul.addr %s270, 8
          %s272 = smul.addr %s271, 8
          %s273 = scalar_lea.vmem %s5, %s272
        $region48: #{bottleneck_forward.3} parent=39 // pred_fallthru
          _
      $region40: #{bottleneck_forward.3} parent=5 // pred_fallthru
        _
      %p274 = scmp.le.s32.totalorder 1, %s17
      %p275 = scmp.lt.s32.totalorder %s17, 3
      %p276 = pnand %p274, %p275
      %p277 = pneg %p276
      // Predicated region
      $region49: #{bottleneck_forward.3} parent=5 // pred_check
        _
      $region50: #{bottleneck_forward.3} parent=5 // pred_check_branch
        %279 = sbr.rel (%p276) target = $region52
      $region51: #{bottleneck_forward.3} parent=5 // pred_region
        %s280 = ssub.s32 %s17, 1
        %p281 = scmp.lt.s32.totalorder %s22, 1
        %s282 = scalar_select %p281, %s22, 1
        %s283 = smul.addr %s282, 18
        %s284 = smul.addr %s283, 8
        %s285 = scalar_lea.vmem %s0, %s284
        %p286 = pneg %p43
        %p287 = pneg %p40
        %p288 = pneg %p64
        %p289 = pneg %p61
        %p290 = pneg %p85
        %p291 = pneg %p82
        %p292 = pneg %p106
        %p293 = pneg %p103
        %p294 = pneg %p127
        %p295 = pneg %p124
        %p296 = scmp.lt.s32.totalorder %s22, 1
        %s297 = scalar_select %p296, %s22, 1
        %s298 = smul.addr %s297, 8
        %s299 = smul.addr %s298, 8
        %s300 = scalar_lea.vmem %s5, %s299
        %p301 = pneg %p153
        %p302 = pneg %p150
        %p303 = pneg %p174
        %p304 = pneg %p171
        %p305 = pneg %p195
        %p306 = pneg %p192
        %p307 = pneg %p221
        %p308 = pneg %p218
        %s309 = sand.u32 %s208, 1
        %s310 = scalar_lea.sflag [#allocation3], %s309
        %s311 = sand.u32 %s208, 1
        %s312 = smul.addr %s311, 64
        %s313 = scalar_lea.vmem [#allocation2], %s312
        %p314 = scmp.lt.s32.totalorder %s22, 1
        %s315 = scalar_select %p314, %s22, 1
        %s316 = smul.addr %s315, 18
        %s317 = smul.addr %s316, 8
        %s318 = scalar_lea.vmem %s0, %s317
        %p319 = scmp.lt.s32.totalorder %s22, 1
        %s320 = scalar_select %p319, %s22, 1
        %s321 = smul.addr %s320, 8
        %s322 = smul.addr %s321, 8
        %s323 = scalar_lea.vmem %s5, %s322
        %v324 = vld [vmem:[%s318] sm:$0xff]
        %v325 = vld [vmem:[%s318 + $0x10] sm:$0xff]
        %v326 = vld [vmem:[%s318 + $0x20] sm:$0xff]
        %v327 = vld [vmem:[%s318 + $0x30] sm:$0xff]
        %v328 = vld [vmem:[%s318 + $0x40] sm:$0xff]
        %v329 = vld [vmem:[%s318 + $0x50] sm:$0xff]
        %v330 = vld [vmem:[%s318 + $0x60] sm:$0xff]
        %v331 = vld [vmem:[%s318 + $0x70] sm:$0xff]
        %v332 = vld [vmem:[%s1] sm:$0xff]
        %v333 = vld [vmem:[%s1 + $0x8] sm:$0xff]
        %v334 = vld [vmem:[%s1 + $0x10] sm:$0xff]
        %v335 = vld [vmem:[%s1 + $0x18] sm:$0xff]
        %v336 = vld [vmem:[%s318 + $0x1] sm:$0xff]
        %v337 = vld [vmem:[%s318 + $0x11] sm:$0xff]
        %v338 = vld [vmem:[%s318 + $0x21] sm:$0xff]
        %v339 = vld [vmem:[%s318 + $0x31] sm:$0xff]
        %v340 = vld [vmem:[%s318 + $0x41] sm:$0xff]
        %v341 = vld [vmem:[%s318 + $0x51] sm:$0xff]
        %v342 = vld [vmem:[%s318 + $0x61] sm:$0xff]
        %v343 = vld [vmem:[%s318 + $0x71] sm:$0xff]
        %s344 = scalar_lea.vmem %s1, 32
        %v345 = vld [vmem:[%s344] sm:$0xff]
        %v346 = vld [vmem:[%s344 + $0x8] sm:$0xff]
        %v347 = vld [vmem:[%s344 + $0x10] sm:$0xff]
        %v348 = vld [vmem:[%s344 + $0x18] sm:$0xff]
        %vm349 = vcmask 261120
        %v351 = vsel %vm349, %v336, 0
        %v354 = vsel %vm349, %v337, 0
        %v357 = vsel %vm349, %v338, 0
        %v360 = vsel %vm349, %v339, 0
        %v363 = vsel %vm349, %v340, 0
        %v366 = vsel %vm349, %v341, 0
        %v369 = vsel %vm349, %v342, 0
        %v372 = vsel %vm349, %v343, 0
        %374 = vmatprep.subr.mxu0 0.0
        %375 = vmatpush1.msra.mxu0 %v345
        %376 = vmatprep.subr.mxu0 0.0
        %377 = vmatpush1.msra.mxu0 %v346
        %378 = vmatprep.subr.mxu0 0.0
        %379 = vmatpush1.msra.mxu0 %v347
        %380 = vmatprep.subr.mxu0 0.0
        %381 = vmatpush1.msra.mxu0 %v348
        %382 = vmatprep.subr.mxu0 0.0
        %383 = vmatpush1.msra.mxu0 0.0
        %384 = vmatprep.subr.mxu0 0.0
        %385 = vmatpush1.msra.mxu0 0.0
        %386 = vmatprep.subr.mxu0 0.0
        %387 = vmatpush1.msra.mxu0 0.0
        %388 = vmatprep.subr.mxu0 0.0
        %389 = vmatpush1.msra.mxu0 0.0
        %390 = vmatprep.subr.mxu0 0.0
        %391 = vmatpush1.msra.mxu0 0.0
        %392 = vmatprep.subr.mxu0 0.0
        %393 = vmatpush1.msra.mxu0 0.0
        %394 = vmatprep.subr.mxu0 0.0
        %395 = vmatpush1.msra.mxu0 0.0
        %396 = vmatprep.subr.mxu0 0.0
        %397 = vmatpush1.msra.mxu0 0.0
        %398 = vmatprep.subr.mxu0 0.0
        %399 = vmatpush1.msra.mxu0 0.0
        %400 = vmatprep.subr.mxu0 0.0
        %401 = vmatpush1.msra.mxu0 0.0
        %402 = vmatprep.subr.mxu0 0.0
        %403 = vmatpush1.msra.mxu0 0.0
        %404 = vmatprep.subr.mxu0 0.0
        %405 = vmatpush1.msra.mxu0 0.0
        %406 = vmatprep.subr.mxu0 0.0
        %407 = vmatpush1.msra.mxu0 0.0
        %408 = vmatprep.subr.mxu0 0.0
        %409 = vmatpush1.msra.mxu0 0.0
        %410 = vmatprep.subr.mxu0 0.0
        %411 = vmatpush1.msra.mxu0 0.0
        %412 = vmatprep.subr.mxu0 0.0
        %413 = vmatpush1.msra.mxu0 0.0
        %414 = vmatprep.subr.mxu0 0.0
        %415 = vmatpush1.msra.mxu0 0.0
        %416 = vmatprep.subr.mxu0 0.0
        %417 = vmatpush1.msra.mxu0 0.0
        %418 = vmatprep.subr.mxu0 0.0
        %419 = vmatpush1.msra.mxu0 0.0
        %420 = vmatprep.subr.mxu0 0.0
        %421 = vmatpush1.msra.mxu0 0.0
        %422 = vmatprep.subr.mxu0 0.0
        %423 = vmatpush1.msra.mxu0 0.0
        %424 = vmatprep.subr.mxu0 0.0
        %425 = vmatpush1.msra.mxu0 0.0
        %426 = vmatprep.subr.mxu0 0.0
        %427 = vmatpush1.msra.mxu0 0.0
        %428 = vmatprep.subr.mxu0 0.0
        %429 = vmatpush1.msra.mxu0 0.0
        %430 = vmatprep.subr.mxu0 0.0
        %431 = vmatpush1.msra.mxu0 0.0
        %432 = vmatprep.subr.mxu0 0.0
        %433 = vmatpush1.msra.mxu0 0.0
        %434 = vmatprep.subr.mxu0 0.0
        %435 = vmatpush1.msra.mxu0 0.0
        %436 = vmatprep.subr.mxu0 0.0
        %437 = vmatpush1.msra.mxu0 0.0
        %438 = vmatprep.mubr.f32.mxu0 0.0
        %439 = vmatmul.mubr.f32.gmra.mrb[0].mxu0 %v351
        %v440 = vpop.f32.mrb[0].mxu0
        %v441 = vadd.f32 0.0, %v440
        %v442 = vpop.f32.mrb[0].mxu0
        %443 = vmatprep.mubr.f32.mxu0 0.0
        %444 = vmatmul.mubr.f32.gmra.mrb[0].mxu0 %v354
        %v445 = vpop.f32.mrb[0].mxu0
        %v446 = vadd.f32 0.0, %v445
        %v447 = vpop.f32.mrb[0].mxu0
        %448 = vmatprep.mubr.f32.mxu0 0.0
        %449 = vmatmul.mubr.f32.gmra.mrb[0].mxu0 %v357
        %v450 = vpop.f32.mrb[0].mxu0
        %v451 = vadd.f32 0.0, %v450
        %v452 = vpop.f32.mrb[0].mxu0
        %453 = vmatprep.mubr.f32.mxu0 0.0
        %454 = vmatmul.mubr.f32.gmra.mrb[0].mxu0 %v360
        %v455 = vpop.f32.mrb[0].mxu0
        %v456 = vadd.f32 0.0, %v455
        %v457 = vpop.f32.mrb[0].mxu0
        %458 = vmatprep.mubr.f32.mxu0 0.0
        %459 = vmatmul.mubr.f32.gmra.mrb[0].mxu0 %v363
        %v460 = vpop.f32.mrb[0].mxu0
        %v461 = vadd.f32 0.0, %v460
        %v462 = vpop.f32.mrb[0].mxu0
        %463 = vmatprep.mubr.f32.mxu0 0.0
        %464 = vmatmul.mubr.f32.gmra.mrb[0].mxu0 %v366
        %v465 = vpop.f32.mrb[0].mxu0
        %v466 = vadd.f32 0.0, %v465
        %v467 = vpop.f32.mrb[0].mxu0
        %468 = vmatprep.mubr.f32.mxu0 0.0
        %469 = vmatmul.mubr.f32.gmra.mrb[0].mxu0 %v369
        %v470 = vpop.f32.mrb[0].mxu0
        %v471 = vadd.f32 0.0, %v470
        %v472 = vpop.f32.mrb[0].mxu0
        %473 = vmatprep.mubr.f32.mxu0 0.0
        %474 = vmatmul.mubr.f32.gmra.mrb[0].mxu0 %v372
        %v475 = vpop.f32.mrb[0].mxu0
        %v476 = vadd.f32 0.0, %v475
        %v477 = vpop.f32.mrb[0].mxu0
        %478 = vdwg.mxu0
        %v480 = vsel %vm349, %v324, 0
        %v483 = vsel %vm349, %v325, 0
        %v486 = vsel %vm349, %v326, 0
        %v489 = vsel %vm349, %v327, 0
        %v492 = vsel %vm349, %v328, 0
        %v495 = vsel %vm349, %v329, 0
        %v498 = vsel %vm349, %v330, 0
        %v501 = vsel %vm349, %v331, 0
        %503 = vmatprep.subr.mxu0 0.0
        %504 = vmatpush1.msra.mxu0 %v332
        %505 = vmatprep.subr.mxu0 0.0
        %506 = vmatpush1.msra.mxu0 %v333
        %507 = vmatprep.subr.mxu0 0.0
        %508 = vmatpush1.msra.mxu0 %v334
        %509 = vmatprep.subr.mxu0 0.0
        %510 = vmatpush1.msra.mxu0 %v335
        %511 = vmatprep.subr.mxu0 0.0
        %512 = vmatpush1.msra.mxu0 0.0
        %513 = vmatprep.subr.mxu0 0.0
        %514 = vmatpush1.msra.mxu0 0.0
        %515 = vmatprep.subr.mxu0 0.0
        %516 = vmatpush1.msra.mxu0 0.0
        %517 = vmatprep.subr.mxu0 0.0
        %518 = vmatpush1.msra.mxu0 0.0
        %519 = vmatprep.subr.mxu0 0.0
        %520 = vmatpush1.msra.mxu0 0.0
        %521 = vmatprep.subr.mxu0 0.0
        %522 = vmatpush1.msra.mxu0 0.0
        %523 = vmatprep.subr.mxu0 0.0
        %524 = vmatpush1.msra.mxu0 0.0
        %525 = vmatprep.subr.mxu0 0.0
        %526 = vmatpush1.msra.mxu0 0.0
        %527 = vmatprep.subr.mxu0 0.0
        %528 = vmatpush1.msra.mxu0 0.0
        %529 = vmatprep.subr.mxu0 0.0
        %530 = vmatpush1.msra.mxu0 0.0
        %531 = vmatprep.subr.mxu0 0.0
        %532 = vmatpush1.msra.mxu0 0.0
        %533 = vmatprep.subr.mxu0 0.0
        %534 = vmatpush1.msra.mxu0 0.0
        %535 = vmatprep.subr.mxu0 0.0
        %536 = vmatpush1.msra.mxu0 0.0
        %537 = vmatprep.subr.mxu0 0.0
        %538 = vmatpush1.msra.mxu0 0.0
        %539 = vmatprep.subr.mxu0 0.0
        %540 = vmatpush1.msra.mxu0 0.0
        %541 = vmatprep.subr.mxu0 0.0
        %542 = vmatpush1.msra.mxu0 0.0
        %543 = vmatprep.subr.mxu0 0.0
        %544 = vmatpush1.msra.mxu0 0.0
        %545 = vmatprep.subr.mxu0 0.0
        %546 = vmatpush1.msra.mxu0 0.0
        %547 = vmatprep.subr.mxu0 0.0
        %548 = vmatpush1.msra.mxu0 0.0
        %549 = vmatprep.subr.mxu0 0.0
        %550 = vmatpush1.msra.mxu0 0.0
        %551 = vmatprep.subr.mxu0 0.0
        %552 = vmatpush1.msra.mxu0 0.0
        %553 = vmatprep.subr.mxu0 0.0
        %554 = vmatpush1.msra.mxu0 0.0
        %555 = vmatprep.subr.mxu0 0.0
        %556 = vmatpush1.msra.mxu0 0.0
        %557 = vmatprep.subr.mxu0 0.0
        %558 = vmatpush1.msra.mxu0 0.0
        %559 = vmatprep.subr.mxu0 0.0
        %560 = vmatpush1.msra.mxu0 0.0
        %561 = vmatprep.subr.mxu0 0.0
        %562 = vmatpush1.msra.mxu0 0.0
        %563 = vmatprep.subr.mxu0 0.0
        %564 = vmatpush1.msra.mxu0 0.0
        %565 = vmatprep.subr.mxu0 0.0
        %566 = vmatpush1.msra.mxu0 0.0
        %567 = vmatprep.mubr.f32.mxu0 0.0
        %568 = vmatmul.mubr.f32.gmra.mrb[0].mxu0 %v480
        %v569 = vpop.f32.mrb[0].mxu0
        %v570 = vadd.f32 %v441, %v569
        %v571 = vpop.f32.mrb[0].mxu0
        %572 = vmatprep.mubr.f32.mxu0 0.0
        %573 = vmatmul.mubr.f32.gmra.mrb[0].mxu0 %v483
        %v574 = vpop.f32.mrb[0].mxu0
        %v575 = vadd.f32 %v446, %v574
        %v576 = vpop.f32.mrb[0].mxu0
        %577 = vmatprep.mubr.f32.mxu0 0.0
        %578 = vmatmul.mubr.f32.gmra.mrb[0].mxu0 %v486
        %v579 = vpop.f32.mrb[0].mxu0
        %v580 = vadd.f32 %v451, %v579
        %v581 = vpop.f32.mrb[0].mxu0
        %582 = vmatprep.mubr.f32.mxu0 0.0
        %583 = vmatmul.mubr.f32.gmra.mrb[0].mxu0 %v489
        %v584 = vpop.f32.mrb[0].mxu0
        %v585 = vadd.f32 %v456, %v584
        %v586 = vpop.f32.mrb[0].mxu0
        %587 = vmatprep.mubr.f32.mxu0 0.0
        %588 = vmatmul.mubr.f32.gmra.mrb[0].mxu0 %v492
        %v589 = vpop.f32.mrb[0].mxu0
        %v590 = vadd.f32 %v461, %v589
        %v591 = vpop.f32.mrb[0].mxu0
        %592 = vmatprep.mubr.f32.mxu0 0.0
        %593 = vmatmul.mubr.f32.gmra.mrb[0].mxu0 %v495
        %v594 = vpop.f32.mrb[0].mxu0
        %v595 = vadd.f32 %v466, %v594
        %v596 = vpop.f32.mrb[0].mxu0
        %597 = vmatprep.mubr.f32.mxu0 0.0
        %598 = vmatmul.mubr.f32.gmra.mrb[0].mxu0 %v498
        %v599 = vpop.f32.mrb[0].mxu0
        %v600 = vadd.f32 %v471, %v599
        %v601 = vpop.f32.mrb[0].mxu0
        %602 = vmatprep.mubr.f32.mxu0 0.0
        %603 = vmatmul.mubr.f32.gmra.mrb[0].mxu0 %v501
        %v604 = vpop.f32.mrb[0].mxu0
        %v605 = vadd.f32 %v476, %v604
        %v606 = vpop.f32.mrb[0].mxu0
        %607 = vdwg.mxu0
        %s608 = scalar_lea.vmem %s318, 16
        %v609 = vld [vmem:[%s608] sm:$0xff]
        %v610 = vld [vmem:[%s608 + $0x10] sm:$0xff]
        %v611 = vld [vmem:[%s608 + $0x20] sm:$0xff]
        %v612 = vld [vmem:[%s608 + $0x30] sm:$0xff]
        %v613 = vld [vmem:[%s608 + $0x40] sm:$0xff]
        %v614 = vld [vmem:[%s608 + $0x50] sm:$0xff]
        %v615 = vld [vmem:[%s608 + $0x60] sm:$0xff]
        %v616 = vld [vmem:[%s608 + $0x70] sm:$0xff]
        %s617 = scalar_lea.vmem %s1, 64
        %v618 = vld [vmem:[%s617] sm:$0xff]
        %v619 = vld [vmem:[%s617 + $0x8] sm:$0xff]
        %v620 = vld [vmem:[%s617 + $0x10] sm:$0xff]
        %v621 = vld [vmem:[%s617 + $0x18] sm:$0xff]
        %v623 = vsel %vm349, %v609, 0
        %v626 = vsel %vm349, %v610, 0
        %v629 = vsel %vm349, %v611, 0
        %v632 = vsel %vm349, %v612, 0
        %v635 = vsel %vm349, %v613, 0
        %v638 = vsel %vm349, %v614, 0
        %v641 = vsel %vm349, %v615, 0
        %v644 = vsel %vm349, %v616, 0
        %646 = vmatprep.subr.mxu0 0.0
        %647 = vmatpush1.msra.mxu0 %v618
        %648 = vmatprep.subr.mxu0 0.0
        %649 = vmatpush1.msra.mxu0 %v619
        %650 = vmatprep.subr.mxu0 0.0
        %651 = vmatpush1.msra.mxu0 %v620
        %652 = vmatprep.subr.mxu0 0.0
        %653 = vmatpush1.msra.mxu0 %v621
        %654 = vmatprep.subr.mxu0 0.0
        %655 = vmatpush1.msra.mxu0 0.0
        %656 = vmatprep.subr.mxu0 0.0
        %657 = vmatpush1.msra.mxu0 0.0
        %658 = vmatprep.subr.mxu0 0.0
        %659 = vmatpush1.msra.mxu0 0.0
        %660 = vmatprep.subr.mxu0 0.0
        %661 = vmatpush1.msra.mxu0 0.0
        %662 = vmatprep.subr.mxu0 0.0
        %663 = vmatpush1.msra.mxu0 0.0
        %664 = vmatprep.subr.mxu0 0.0
        %665 = vmatpush1.msra.mxu0 0.0
        %666 = vmatprep.subr.mxu0 0.0
        %667 = vmatpush1.msra.mxu0 0.0
        %668 = vmatprep.subr.mxu0 0.0
        %669 = vmatpush1.msra.mxu0 0.0
        %670 = vmatprep.subr.mxu0 0.0
        %671 = vmatpush1.msra.mxu0 0.0
        %672 = vmatprep.subr.mxu0 0.0
        %673 = vmatpush1.msra.mxu0 0.0
        %674 = vmatprep.subr.mxu0 0.0
        %675 = vmatpush1.msra.mxu0 0.0
        %676 = vmatprep.subr.mxu0 0.0
        %677 = vmatpush1.msra.mxu0 0.0
        %678 = vmatprep.subr.mxu0 0.0
        %679 = vmatpush1.msra.mxu0 0.0
        %680 = vmatprep.subr.mxu0 0.0
        %681 = vmatpush1.msra.mxu0 0.0
        %682 = vmatprep.subr.mxu0 0.0
        %683 = vmatpush1.msra.mxu0 0.0
        %684 = vmatprep.subr.mxu0 0.0
        %685 = vmatpush1.msra.mxu0 0.0
        %686 = vmatprep.subr.mxu0 0.0
        %687 = vmatpush1.msra.mxu0 0.0
        %688 = vmatprep.subr.mxu0 0.0
        %689 = vmatpush1.msra.mxu0 0.0
        %690 = vmatprep.subr.mxu0 0.0
        %691 = vmatpush1.msra.mxu0 0.0
        %692 = vmatprep.subr.mxu0 0.0
        %693 = vmatpush1.msra.mxu0 0.0
        %694 = vmatprep.subr.mxu0 0.0
        %695 = vmatpush1.msra.mxu0 0.0
        %696 = vmatprep.subr.mxu0 0.0
        %697 = vmatpush1.msra.mxu0 0.0
        %698 = vmatprep.subr.mxu0 0.0
        %699 = vmatpush1.msra.mxu0 0.0
        %700 = vmatprep.subr.mxu0 0.0
        %701 = vmatpush1.msra.mxu0 0.0
        %702 = vmatprep.subr.mxu0 0.0
        %703 = vmatpush1.msra.mxu0 0.0
        %704 = vmatprep.subr.mxu0 0.0
        %705 = vmatpush1.msra.mxu0 0.0
        %706 = vmatprep.subr.mxu0 0.0
        %707 = vmatpush1.msra.mxu0 0.0
        %708 = vmatprep.subr.mxu0 0.0
        %709 = vmatpush1.msra.mxu0 0.0
        %710 = vmatprep.mubr.f32.mxu0 0.0
        %711 = vmatmul.mubr.f32.gmra.mrb[0].mxu0 %v623
        %v712 = vpop.f32.mrb[0].mxu0
        %v713 = vadd.f32 0.0, %v712
        %v714 = vpop.f32.mrb[0].mxu0
        %715 = vmatprep.mubr.f32.mxu0 0.0
        %716 = vmatmul.mubr.f32.gmra.mrb[0].mxu0 %v626
        %v717 = vpop.f32.mrb[0].mxu0
        %v718 = vadd.f32 0.0, %v717
        %v719 = vpop.f32.mrb[0].mxu0
        %720 = vmatprep.mubr.f32.mxu0 0.0
        %721 = vmatmul.mubr.f32.gmra.mrb[0].mxu0 %v629
        %v722 = vpop.f32.mrb[0].mxu0
        %v723 = vadd.f32 0.0, %v722
        %v724 = vpop.f32.mrb[0].mxu0
        %725 = vmatprep.mubr.f32.mxu0 0.0
        %726 = vmatmul.mubr.f32.gmra.mrb[0].mxu0 %v632
        %v727 = vpop.f32.mrb[0].mxu0
        %v728 = vadd.f32 0.0, %v727
        %v729 = vpop.f32.mrb[0].mxu0
        %730 = vmatprep.mubr.f32.mxu0 0.0
        %731 = vmatmul.mubr.f32.gmra.mrb[0].mxu0 %v635
        %v732 = vpop.f32.mrb[0].mxu0
        %v733 = vadd.f32 0.0, %v732
        %v734 = vpop.f32.mrb[0].mxu0
        %735 = vmatprep.mubr.f32.mxu0 0.0
        %736 = vmatmul.mubr.f32.gmra.mrb[0].mxu0 %v638
        %v737 = vpop.f32.mrb[0].mxu0
        %v738 = vadd.f32 0.0, %v737
        %v739 = vpop.f32.mrb[0].mxu0
        %740 = vmatprep.mubr.f32.mxu0 0.0
        %741 = vmatmul.mubr.f32.gmra.mrb[0].mxu0 %v641
        %v742 = vpop.f32.mrb[0].mxu0
        %v743 = vadd.f32 0.0, %v742
        %v744 = vpop.f32.mrb[0].mxu0
        %745 = vmatprep.mubr.f32.mxu0 0.0
        %746 = vmatmul.mubr.f32.gmra.mrb[0].mxu0 %v644
        %v747 = vpop.f32.mrb[0].mxu0
        %v748 = vadd.f32 0.0, %v747
        %v749 = vpop.f32.mrb[0].mxu0
        %750 = vdwg.mxu0
        %v751 = vadd.f32 %v570, %v713
        %v752 = vadd.f32 %v575, %v718
        %v753 = vadd.f32 %v580, %v723
        %v754 = vadd.f32 %v585, %v728
        %v755 = vadd.f32 %v590, %v733
        %v756 = vadd.f32 %v595, %v738
        %v757 = vadd.f32 %v600, %v743
        %v758 = vadd.f32 %v605, %v748
        %v759 = vld [vmem:[%s608 + $0x1] sm:$0xff]
        %v760 = vld [vmem:[%s608 + $0x11] sm:$0xff]
        %v761 = vld [vmem:[%s608 + $0x21] sm:$0xff]
        %v762 = vld [vmem:[%s608 + $0x31] sm:$0xff]
        %v763 = vld [vmem:[%s608 + $0x41] sm:$0xff]
        %v764 = vld [vmem:[%s608 + $0x51] sm:$0xff]
        %v765 = vld [vmem:[%s608 + $0x61] sm:$0xff]
        %v766 = vld [vmem:[%s608 + $0x71] sm:$0xff]
        %s767 = scalar_lea.vmem %s1, 96
        %v768 = vld [vmem:[%s767] sm:$0xff]
        %v769 = vld [vmem:[%s767 + $0x8] sm:$0xff]
        %v770 = vld [vmem:[%s767 + $0x10] sm:$0xff]
        %v771 = vld [vmem:[%s767 + $0x18] sm:$0xff]
        %v773 = vsel %vm349, %v759, 0
        %v776 = vsel %vm349, %v760, 0
        %v779 = vsel %vm349, %v761, 0
        %v782 = vsel %vm349, %v762, 0
        %v785 = vsel %vm349, %v763, 0
        %v788 = vsel %vm349, %v764, 0
        %v791 = vsel %vm349, %v765, 0
        %v794 = vsel %vm349, %v766, 0
        %796 = vmatprep.subr.mxu0 0.0
        %797 = vmatpush1.msra.mxu0 %v768
        %798 = vmatprep.subr.mxu0 0.0
        %799 = vmatpush1.msra.mxu0 %v769
        %800 = vmatprep.subr.mxu0 0.0
        %801 = vmatpush1.msra.mxu0 %v770
        %802 = vmatprep.subr.mxu0 0.0
        %803 = vmatpush1.msra.mxu0 %v771
        %804 = vmatprep.subr.mxu0 0.0
        %805 = vmatpush1.msra.mxu0 0.0
        %806 = vmatprep.subr.mxu0 0.0
        %807 = vmatpush1.msra.mxu0 0.0
        %808 = vmatprep.subr.mxu0 0.0
        %809 = vmatpush1.msra.mxu0 0.0
        %810 = vmatprep.subr.mxu0 0.0
        %811 = vmatpush1.msra.mxu0 0.0
        %812 = vmatprep.subr.mxu0 0.0
        %813 = vmatpush1.msra.mxu0 0.0
        %814 = vmatprep.subr.mxu0 0.0
        %815 = vmatpush1.msra.mxu0 0.0
        %816 = vmatprep.subr.mxu0 0.0
        %817 = vmatpush1.msra.mxu0 0.0
        %818 = vmatprep.subr.mxu0 0.0
        %819 = vmatpush1.msra.mxu0 0.0
        %820 = vmatprep.subr.mxu0 0.0
        %821 = vmatpush1.msra.mxu0 0.0
        %822 = vmatprep.subr.mxu0 0.0
        %823 = vmatpush1.msra.mxu0 0.0
        %824 = vmatprep.subr.mxu0 0.0
        %825 = vmatpush1.msra.mxu0 0.0
        %826 = vmatprep.subr.mxu0 0.0
        %827 = vmatpush1.msra.mxu0 0.0
        %828 = vmatprep.subr.mxu0 0.0
        %829 = vmatpush1.msra.mxu0 0.0
        %830 = vmatprep.subr.mxu0 0.0
        %831 = vmatpush1.msra.mxu0 0.0
        %832 = vmatprep.subr.mxu0 0.0
        %833 = vmatpush1.msra.mxu0 0.0
        %834 = vmatprep.subr.mxu0 0.0
        %835 = vmatpush1.msra.mxu0 0.0
        %836 = vmatprep.subr.mxu0 0.0
        %837 = vmatpush1.msra.mxu0 0.0
        %838 = vmatprep.subr.mxu0 0.0
        %839 = vmatpush1.msra.mxu0 0.0
        %840 = vmatprep.subr.mxu0 0.0
        %841 = vmatpush1.msra.mxu0 0.0
        %842 = vmatprep.subr.mxu0 0.0
        %843 = vmatpush1.msra.mxu0 0.0
        %844 = vmatprep.subr.mxu0 0.0
        %845 = vmatpush1.msra.mxu0 0.0
        %846 = vmatprep.subr.mxu0 0.0
        %847 = vmatpush1.msra.mxu0 0.0
        %848 = vmatprep.subr.mxu0 0.0
        %849 = vmatpush1.msra.mxu0 0.0
        %850 = vmatprep.subr.mxu0 0.0
        %851 = vmatpush1.msra.mxu0 0.0
        %852 = vmatprep.subr.mxu0 0.0
        %853 = vmatpush1.msra.mxu0 0.0
        %854 = vmatprep.subr.mxu0 0.0
        %855 = vmatpush1.msra.mxu0 0.0
        %856 = vmatprep.subr.mxu0 0.0
        %857 = vmatpush1.msra.mxu0 0.0
        %858 = vmatprep.subr.mxu0 0.0
        %859 = vmatpush1.msra.mxu0 0.0
        %860 = vmatprep.mubr.f32.mxu0 0.0
        %861 = vmatmul.mubr.f32.gmra.mrb[0].mxu0 %v773
        %v862 = vpop.f32.mrb[0].mxu0
        %v863 = vadd.f32 0.0, %v862
        %v864 = vpop.f32.mrb[0].mxu0
        %865 = vmatprep.mubr.f32.mxu0 0.0
        %866 = vmatmul.mubr.f32.gmra.mrb[0].mxu0 %v776
        %v867 = vpop.f32.mrb[0].mxu0
        %v868 = vadd.f32 0.0, %v867
        %v869 = vpop.f32.mrb[0].mxu0
        %870 = vmatprep.mubr.f32.mxu0 0.0
        %871 = vmatmul.mubr.f32.gmra.mrb[0].mxu0 %v779
        %v872 = vpop.f32.mrb[0].mxu0
        %v873 = vadd.f32 0.0, %v872
        %v874 = vpop.f32.mrb[0].mxu0
        %875 = vmatprep.mubr.f32.mxu0 0.0
        %876 = vmatmul.mubr.f32.gmra.mrb[0].mxu0 %v782
        %v877 = vpop.f32.mrb[0].mxu0
        %v878 = vadd.f32 0.0, %v877
        %v879 = vpop.f32.mrb[0].mxu0
        %880 = vmatprep.mubr.f32.mxu0 0.0
        %881 = vmatmul.mubr.f32.gmra.mrb[0].mxu0 %v785
        %v882 = vpop.f32.mrb[0].mxu0
        %v883 = vadd.f32 0.0, %v882
        %v884 = vpop.f32.mrb[0].mxu0
        %885 = vmatprep.mubr.f32.mxu0 0.0
        %886 = vmatmul.mubr.f32.gmra.mrb[0].mxu0 %v788
        %v887 = vpop.f32.mrb[0].mxu0
        %v888 = vadd.f32 0.0, %v887
        %v889 = vpop.f32.mrb[0].mxu0
        %890 = vmatprep.mubr.f32.mxu0 0.0
        %891 = vmatmul.mubr.f32.gmra.mrb[0].mxu0 %v791
        %v892 = vpop.f32.mrb[0].mxu0
        %v893 = vadd.f32 0.0, %v892
        %v894 = vpop.f32.mrb[0].mxu0
        %895 = vmatprep.mubr.f32.mxu0 0.0
        %896 = vmatmul.mubr.f32.gmra.mrb[0].mxu0 %v794
        %v897 = vpop.f32.mrb[0].mxu0
        %v898 = vadd.f32 0.0, %v897
        %v899 = vpop.f32.mrb[0].mxu0
        %900 = vdwg.mxu0
        %v901 = vadd.f32 %v751, %v863
        %v902 = vadd.f32 %v752, %v868
        %v903 = vadd.f32 %v753, %v873
        %v904 = vadd.f32 %v754, %v878
        %v905 = vadd.f32 %v755, %v883
        %v906 = vadd.f32 %v756, %v888
        %v907 = vadd.f32 %v757, %v893
        %v908 = vadd.f32 %v758, %v898
        %v909 = vld [vmem:[%s2] sm:$0x1]
        %v911 = vlaneseq
        %v912 = vshrl.u32 %v911, 7
        %v913 = vsub.s32 0, %v912
        %v914 = vrot.slane %v909, %v913
        %v916 = vadd.f32 %v901, %v914
        %v917 = vadd.f32 %v902, %v914
        %v918 = vadd.f32 %v903, %v914
        %v919 = vadd.f32 %v904, %v914
        %v920 = vadd.f32 %v905, %v914
        %v921 = vadd.f32 %v906, %v914
        %v922 = vadd.f32 %v907, %v914
        %v923 = vadd.f32 %v908, %v914
        %v924 = vmax.f32 %v916, 0.0
        %v925 = vmax.f32 %v917, 0.0
        %v926 = vmax.f32 %v918, 0.0
        %v927 = vmax.f32 %v919, 0.0
        %v928 = vmax.f32 %v920, 0.0
        %v929 = vmax.f32 %v921, 0.0
        %v930 = vmax.f32 %v922, 0.0
        %v931 = vmax.f32 %v923, 0.0
        %v932 = vld [vmem:[%s3] sm:$0xff]
        %v933 = vld [vmem:[%s4] sm:$0x1]
        %v935 = vlaneseq
        %v936 = vshrl.u32 %v935, 7
        %v937 = vsub.s32 0, %v936
        %v938 = vrot.slane %v933, %v937
        %vm940 = vcmask 64512
        %v942 = vsel %vm940, %v924, 0
        %v945 = vsel %vm940, %v925, 0
        %v948 = vsel %vm940, %v926, 0
        %v951 = vsel %vm940, %v927, 0
        %v954 = vsel %vm940, %v928, 0
        %v957 = vsel %vm940, %v929, 0
        %v960 = vsel %vm940, %v930, 0
        %v963 = vsel %vm940, %v931, 0
        %965 = vmatprep.subr.mxu0 0.0
        %966 = vmatpush1.msra.mxu0 %v932
        %967 = vmatprep.subr.mxu0 0.0
        %968 = vmatpush1.msra.mxu0 0.0
        %969 = vmatprep.subr.mxu0 0.0
        %970 = vmatpush1.msra.mxu0 0.0
        %971 = vmatprep.subr.mxu0 0.0
        %972 = vmatpush1.msra.mxu0 0.0
        %973 = vmatprep.subr.mxu0 0.0
        %974 = vmatpush1.msra.mxu0 0.0
        %975 = vmatprep.subr.mxu0 0.0
        %976 = vmatpush1.msra.mxu0 0.0
        %977 = vmatprep.subr.mxu0 0.0
        %978 = vmatpush1.msra.mxu0 0.0
        %979 = vmatprep.subr.mxu0 0.0
        %980 = vmatpush1.msra.mxu0 0.0
        %981 = vmatprep.subr.mxu0 0.0
        %982 = vmatpush1.msra.mxu0 0.0
        %983 = vmatprep.subr.mxu0 0.0
        %984 = vmatpush1.msra.mxu0 0.0
        %985 = vmatprep.subr.mxu0 0.0
        %986 = vmatpush1.msra.mxu0 0.0
        %987 = vmatprep.subr.mxu0 0.0
        %988 = vmatpush1.msra.mxu0 0.0
        %989 = vmatprep.subr.mxu0 0.0
        %990 = vmatpush1.msra.mxu0 0.0
        %991 = vmatprep.subr.mxu0 0.0
        %992 = vmatpush1.msra.mxu0 0.0
        %993 = vmatprep.subr.mxu0 0.0
        %994 = vmatpush1.msra.mxu0 0.0
        %995 = vmatprep.subr.mxu0 0.0
        %996 = vmatpush1.msra.mxu0 0.0
        %997 = vmatprep.subr.mxu0 0.0
        %998 = vmatpush1.msra.mxu0 0.0
        %999 = vmatprep.subr.mxu0 0.0
        %1000 = vmatpush1.msra.mxu0 0.0
        %1001 = vmatprep.subr.mxu0 0.0
        %1002 = vmatpush1.msra.mxu0 0.0
        %1003 = vmatprep.subr.mxu0 0.0
        %1004 = vmatpush1.msra.mxu0 0.0
        %1005 = vmatprep.subr.mxu0 0.0
        %1006 = vmatpush1.msra.mxu0 0.0
        %1007 = vmatprep.subr.mxu0 0.0
        %1008 = vmatpush1.msra.mxu0 0.0
        %1009 = vmatprep.subr.mxu0 0.0
        %1010 = vmatpush1.msra.mxu0 0.0
        %1011 = vmatprep.subr.mxu0 0.0
        %1012 = vmatpush1.msra.mxu0 0.0
        %1013 = vmatprep.subr.mxu0 0.0
        %1014 = vmatpush1.msra.mxu0 0.0
        %1015 = vmatprep.subr.mxu0 0.0
        %1016 = vmatpush1.msra.mxu0 0.0
        %1017 = vmatprep.subr.mxu0 0.0
        %1018 = vmatpush1.msra.mxu0 0.0
        %1019 = vmatprep.subr.mxu0 0.0
        %1020 = vmatpush1.msra.mxu0 0.0
        %1021 = vmatprep.subr.mxu0 0.0
        %1022 = vmatpush1.msra.mxu0 0.0
        %1023 = vmatprep.subr.mxu0 0.0
        %1024 = vmatpush1.msra.mxu0 0.0
        %1025 = vmatprep.subr.mxu0 0.0
        %1026 = vmatpush1.msra.mxu0 0.0
        %1027 = vmatprep.subr.mxu0 0.0
        %1028 = vmatpush1.msra.mxu0 0.0
        %1029 = vmatprep.mubr.f32.mxu0 0.0
        %1030 = vmatmul.mubr.f32.gmra.mrb[0].mxu0 %v942
        %v1031 = vpop.f32.mrb[0].mxu0
        %v1032 = vadd.f32 %v938, %v1031
        %v1033 = vpop.f32.mrb[0].mxu0
        %1034 = vmatprep.mubr.f32.mxu0 0.0
        %1035 = vmatmul.mubr.f32.gmra.mrb[0].mxu0 %v945
        %v1036 = vpop.f32.mrb[0].mxu0
        %v1037 = vadd.f32 %v938, %v1036
        %v1038 = vpop.f32.mrb[0].mxu0
        %1039 = vmatprep.mubr.f32.mxu0 0.0
        %1040 = vmatmul.mubr.f32.gmra.mrb[0].mxu0 %v948
        %v1041 = vpop.f32.mrb[0].mxu0
        %v1042 = vadd.f32 %v938, %v1041
        %v1043 = vpop.f32.mrb[0].mxu0
        %1044 = vmatprep.mubr.f32.mxu0 0.0
        %1045 = vmatmul.mubr.f32.gmra.mrb[0].mxu0 %v951
        %v1046 = vpop.f32.mrb[0].mxu0
        %v1047 = vadd.f32 %v938, %v1046
        %v1048 = vpop.f32.mrb[0].mxu0
        %1049 = vmatprep.mubr.f32.mxu0 0.0
        %1050 = vmatmul.mubr.f32.gmra.mrb[0].mxu0 %v954
        %v1051 = vpop.f32.mrb[0].mxu0
        %v1052 = vadd.f32 %v938, %v1051
        %v1053 = vpop.f32.mrb[0].mxu0
        %1054 = vmatprep.mubr.f32.mxu0 0.0
        %1055 = vmatmul.mubr.f32.gmra.mrb[0].mxu0 %v957
        %v1056 = vpop.f32.mrb[0].mxu0
        %v1057 = vadd.f32 %v938, %v1056
        %v1058 = vpop.f32.mrb[0].mxu0
        %1059 = vmatprep.mubr.f32.mxu0 0.0
        %1060 = vmatmul.mubr.f32.gmra.mrb[0].mxu0 %v960
        %v1061 = vpop.f32.mrb[0].mxu0
        %v1062 = vadd.f32 %v938, %v1061
        %v1063 = vpop.f32.mrb[0].mxu0
        %1064 = vmatprep.mubr.f32.mxu0 0.0
        %1065 = vmatmul.mubr.f32.gmra.mrb[0].mxu0 %v963
        %v1066 = vpop.f32.mrb[0].mxu0
        %v1067 = vadd.f32 %v938, %v1066
        %v1068 = vpop.f32.mrb[0].mxu0
        %1069 = vdwg.mxu0
        %v1070 = vld [vmem:[%s323] sm:$0xff]
        %v1071 = vld [vmem:[%s323 + $0x8] sm:$0xff]
        %v1072 = vld [vmem:[%s323 + $0x10] sm:$0xff]
        %v1073 = vld [vmem:[%s323 + $0x18] sm:$0xff]
        %v1074 = vld [vmem:[%s323 + $0x20] sm:$0xff]
        %v1075 = vld [vmem:[%s323 + $0x28] sm:$0xff]
        %v1076 = vld [vmem:[%s323 + $0x30] sm:$0xff]
        %v1077 = vld [vmem:[%s323 + $0x38] sm:$0xff]
        %v1078 = vld [vmem:[%s6] sm:$0xff]
        %v1079 = vld [vmem:[%s6 + $0x8] sm:$0xff]
        %v1080 = vld [vmem:[%s7] sm:$0x1]
        %v1082 = vlaneseq
        %v1083 = vshrl.u32 %v1082, 7
        %v1084 = vsub.s32 0, %v1083
        %v1085 = vrot.slane %v1080, %v1084
        %vm1087 = vcmask 130048
        %v1089 = vsel %vm1087, %v1070, 0
        %v1092 = vsel %vm1087, %v1071, 0
        %v1095 = vsel %vm1087, %v1072, 0
        %v1098 = vsel %vm1087, %v1073, 0
        %v1101 = vsel %vm1087, %v1074, 0
        %v1104 = vsel %vm1087, %v1075, 0
        %v1107 = vsel %vm1087, %v1076, 0
        %v1110 = vsel %vm1087, %v1077, 0
        %1112 = vmatprep.subr.mxu0 0.0
        %1113 = vmatpush1.msra.mxu0 %v1078
        %1114 = vmatprep.subr.mxu0 0.0
        %1115 = vmatpush1.msra.mxu0 %v1079
        %1116 = vmatprep.subr.mxu0 0.0
        %1117 = vmatpush1.msra.mxu0 0.0
        %1118 = vmatprep.subr.mxu0 0.0
        %1119 = vmatpush1.msra.mxu0 0.0
        %1120 = vmatprep.subr.mxu0 0.0
        %1121 = vmatpush1.msra.mxu0 0.0
        %1122 = vmatprep.subr.mxu0 0.0
        %1123 = vmatpush1.msra.mxu0 0.0
        %1124 = vmatprep.subr.mxu0 0.0
        %1125 = vmatpush1.msra.mxu0 0.0
        %1126 = vmatprep.subr.mxu0 0.0
        %1127 = vmatpush1.msra.mxu0 0.0
        %1128 = vmatprep.subr.mxu0 0.0
        %1129 = vmatpush1.msra.mxu0 0.0
        %1130 = vmatprep.subr.mxu0 0.0
        %1131 = vmatpush1.msra.mxu0 0.0
        %1132 = vmatprep.subr.mxu0 0.0
        %1133 = vmatpush1.msra.mxu0 0.0
        %1134 = vmatprep.subr.mxu0 0.0
        %1135 = vmatpush1.msra.mxu0 0.0
        %1136 = vmatprep.subr.mxu0 0.0
        %1137 = vmatpush1.msra.mxu0 0.0
        %1138 = vmatprep.subr.mxu0 0.0
        %1139 = vmatpush1.msra.mxu0 0.0
        %1140 = vmatprep.subr.mxu0 0.0
        %1141 = vmatpush1.msra.mxu0 0.0
        %1142 = vmatprep.subr.mxu0 0.0
        %1143 = vmatpush1.msra.mxu0 0.0
        %1144 = vmatprep.subr.mxu0 0.0
        %1145 = vmatpush1.msra.mxu0 0.0
        %1146 = vmatprep.subr.mxu0 0.0
        %1147 = vmatpush1.msra.mxu0 0.0
        %1148 = vmatprep.subr.mxu0 0.0
        %1149 = vmatpush1.msra.mxu0 0.0
        %1150 = vmatprep.subr.mxu0 0.0
        %1151 = vmatpush1.msra.mxu0 0.0
        %1152 = vmatprep.subr.mxu0 0.0
        %1153 = vmatpush1.msra.mxu0 0.0
        %1154 = vmatprep.subr.mxu0 0.0
        %1155 = vmatpush1.msra.mxu0 0.0
        %1156 = vmatprep.subr.mxu0 0.0
        %1157 = vmatpush1.msra.mxu0 0.0
        %1158 = vmatprep.subr.mxu0 0.0
        %1159 = vmatpush1.msra.mxu0 0.0
        %1160 = vmatprep.subr.mxu0 0.0
        %1161 = vmatpush1.msra.mxu0 0.0
        %1162 = vmatprep.subr.mxu0 0.0
        %1163 = vmatpush1.msra.mxu0 0.0
        %1164 = vmatprep.subr.mxu0 0.0
        %1165 = vmatpush1.msra.mxu0 0.0
        %1166 = vmatprep.subr.mxu0 0.0
        %1167 = vmatpush1.msra.mxu0 0.0
        %1168 = vmatprep.subr.mxu0 0.0
        %1169 = vmatpush1.msra.mxu0 0.0
        %1170 = vmatprep.subr.mxu0 0.0
        %1171 = vmatpush1.msra.mxu0 0.0
        %1172 = vmatprep.subr.mxu0 0.0
        %1173 = vmatpush1.msra.mxu0 0.0
        %1174 = vmatprep.subr.mxu0 0.0
        %1175 = vmatpush1.msra.mxu0 0.0
        %1176 = vmatprep.mubr.f32.mxu0 0.0
        %1177 = vmatmul.mubr.f32.gmra.mrb[0].mxu0 %v1089
        %v1178 = vpop.f32.mrb[0].mxu0
        %v1179 = vadd.f32 %v1085, %v1178
        %v1180 = vpop.f32.mrb[0].mxu0
        %1181 = vmatprep.mubr.f32.mxu0 0.0
        %1182 = vmatmul.mubr.f32.gmra.mrb[0].mxu0 %v1092
        %v1183 = vpop.f32.mrb[0].mxu0
        %v1184 = vadd.f32 %v1085, %v1183
        %v1185 = vpop.f32.mrb[0].mxu0
        %1186 = vmatprep.mubr.f32.mxu0 0.0
        %1187 = vmatmul.mubr.f32.gmra.mrb[0].mxu0 %v1095
        %v1188 = vpop.f32.mrb[0].mxu0
        %v1189 = vadd.f32 %v1085, %v1188
        %v1190 = vpop.f32.mrb[0].mxu0
        %1191 = vmatprep.mubr.f32.mxu0 0.0
        %1192 = vmatmul.mubr.f32.gmra.mrb[0].mxu0 %v1098
        %v1193 = vpop.f32.mrb[0].mxu0
        %v1194 = vadd.f32 %v1085, %v1193
        %v1195 = vpop.f32.mrb[0].mxu0
        %1196 = vmatprep.mubr.f32.mxu0 0.0
        %1197 = vmatmul.mubr.f32.gmra.mrb[0].mxu0 %v1101
        %v1198 = vpop.f32.mrb[0].mxu0
        %v1199 = vadd.f32 %v1085, %v1198
        %v1200 = vpop.f32.mrb[0].mxu0
        %1201 = vmatprep.mubr.f32.mxu0 0.0
        %1202 = vmatmul.mubr.f32.gmra.mrb[0].mxu0 %v1104
        %v1203 = vpop.f32.mrb[0].mxu0
        %v1204 = vadd.f32 %v1085, %v1203
        %v1205 = vpop.f32.mrb[0].mxu0
        %1206 = vmatprep.mubr.f32.mxu0 0.0
        %1207 = vmatmul.mubr.f32.gmra.mrb[0].mxu0 %v1107
        %v1208 = vpop.f32.mrb[0].mxu0
        %v1209 = vadd.f32 %v1085, %v1208
        %v1210 = vpop.f32.mrb[0].mxu0
        %1211 = vmatprep.mubr.f32.mxu0 0.0
        %1212 = vmatmul.mubr.f32.gmra.mrb[0].mxu0 %v1110
        %v1213 = vpop.f32.mrb[0].mxu0
        %v1214 = vadd.f32 %v1085, %v1213
        %v1215 = vpop.f32.mrb[0].mxu0
        %1216 = vdwg.mxu0
        %v1217 = vadd.f32 %v1032, %v1179
        %v1218 = vadd.f32 %v1037, %v1184
        %v1219 = vadd.f32 %v1042, %v1189
        %v1220 = vadd.f32 %v1047, %v1194
        %v1221 = vadd.f32 %v1052, %v1199
        %v1222 = vadd.f32 %v1057, %v1204
        %v1223 = vadd.f32 %v1062, %v1209
        %v1224 = vadd.f32 %v1067, %v1214
        %v1225 = vmax.f32 %v1217, 0.0
        %v1226 = vmax.f32 %v1218, 0.0
        %v1227 = vmax.f32 %v1219, 0.0
        %v1228 = vmax.f32 %v1220, 0.0
        %v1229 = vmax.f32 %v1221, 0.0
        %v1230 = vmax.f32 %v1222, 0.0
        %v1231 = vmax.f32 %v1223, 0.0
        %v1232 = vmax.f32 %v1224, 0.0
        %1233 = vst.msk [vmem:[%s313] sm:$0xff] %vm349, %v1225
        %1234 = vst.msk [vmem:[%s313 + $0x8] sm:$0xff] %vm349, %v1226
        %1235 = vst.msk [vmem:[%s313 + $0x10] sm:$0xff] %vm349, %v1227
        %1236 = vst.msk [vmem:[%s313 + $0x18] sm:$0xff] %vm349, %v1228
        %1237 = vst.msk [vmem:[%s313 + $0x20] sm:$0xff] %vm349, %v1229
        %1238 = vst.msk [vmem:[%s313 + $0x28] sm:$0xff] %vm349, %v1230
        %1239 = vst.msk [vmem:[%s313 + $0x30] sm:$0xff] %vm349, %v1231
        %1240 = vst.msk [vmem:[%s313 + $0x38] sm:$0xff] %vm349, %v1232
        %s1241 = sand.u32 %s208, 1
        %s1242 = scalar_lea.sflag [#allocation3], %s1241
        %s1243 = sand.u32 %s208, 1
        %s1244 = smul.addr %s1243, 64
        %s1245 = scalar_lea.vmem [#allocation2], %s1244
        // Predicated region
        $region53: #{bottleneck_forward.3} parent=51 // pred_check
          %p1246 = pneg %p218
        $region54: #{bottleneck_forward.3} parent=51 // pred_check_branch
          %1248 = sbr.rel (%p1246) target = $region56
        $region55: #{bottleneck_forward.3} parent=51 // pred_region
          %s1250 = ssub.s32 1024, 1024
          %1251 = vsyncadd %s1242, %s1250
          %s1252 = smul.addr %s22, 8
          %s1253 = smul.addr %s1252, 128
          %s1254 = scalar_lea.hbm %s8, %s1253
          %s1255 = sshll.u32 %s1245, 4
          %s1256 = int_to_ptr.vmem [resolvable:$true] %s1255
          %1261 = dma.vmem_to_hbm [thread:$0]  %s1256, 1024, %s1254, %s1242, 128, 128, 8
        $region56: #{bottleneck_forward.3} parent=51 // pred_fallthru
          _
      $region52: #{bottleneck_forward.3} parent=5 // pred_fallthru
        _
      %p1262 = scmp.le.s32.totalorder 2, %s17
      // Predicated region
      $region57: #{bottleneck_forward.3} parent=5 // pred_check
        %p1263 = pneg %p1262
      $region58: #{bottleneck_forward.3} parent=5 // pred_check_branch
        %1265 = sbr.rel (%p1263) target = $region60
      $region59: #{bottleneck_forward.3} parent=5 // pred_region
        %s1266 = ssub.s32 %s17, 2
        // Predicated region
        $region61: #{bottleneck_forward.3} parent=59 // pred_check
          %p1267 = pneg %p224
        $region62: #{bottleneck_forward.3} parent=59 // pred_check_branch
          %1269 = sbr.rel (%p1267) target = $region64
        $region63: #{bottleneck_forward.3} parent=59 // pred_region
          %s1270 = sand.u32 %s209, 1
          %s1271 = scalar_lea.sflag [#allocation3], %s1270
          %s1272 = sand.u32 %s209, 1
          %s1273 = smul.addr %s1272, 64
          %s1274 = scalar_lea.vmem [#allocation2], %s1273
          %1275 = dma.done %s1271, 1024
        $region64: #{bottleneck_forward.3} parent=59 // pred_fallthru
          _
      $region60: #{bottleneck_forward.3} parent=5 // pred_fallthru
        _
    $region6: #{bottleneck_forward.3} parent=1 // loop_footer
      %s21 = sadd.s32 1, %s17
    $region7: #{bottleneck_forward.3} parent=1 // loop_footer_branch
      %16 = sbr.rel target = $region3
    $region8: #{bottleneck_forward.3} parent=1 // loop_exit
      _
    %1276 = vsyncpa [#allocation3], 1
    %s1277 = scalar_lea.sflag [#allocation3], 1
    %1278 = vsyncpa %s1277, 1

</llo_original>
